<compile_context>
chip_gen: v7x
topology: tpu7x:2x2x1
jax: 0.10.0
libtpu: 0.0.40
codegen_flags: <defaults>
</compile_context>

<pallas_src>
import functools

import jax
import jax.numpy as jnp
from jax.experimental import pallas as pl
from jax.experimental.pallas import tpu as pltpu


def _round_up(x: int, m: int) -> int:
    return ((x + m - 1) // m) * m


def _state_predictor_kernel(s_ref, a_ref, w1a_ref, rows_ref, w2_ref, out_ref,
                            *, tb, latent_dim, out_dim, action_resident):
    # s:   (tb, F)    f32      a: (B_pad, 1) or (tb, 1) f32
    # w1a: (F, L)     bf16     rows: (3, Nmax) f32  [w1b; b1; b2]
    # w2:  (L, Fout)  bf16     out: (tb, Fout) f32
    s = s_ref[...]

    if action_resident:
        # Whole padded action column is resident; slice this block's rows.
        start = pl.multiple_of(pl.program_id(0) * tb, tb)
        a = a_ref[pl.ds(start, tb), :]                       # (tb, 1)
    else:
        a = a_ref[...]                                       # (tb, 1)

    w1b = rows_ref[0:1, :latent_dim]                         # (1, L)
    b1 = rows_ref[1:2, :latent_dim]                          # (1, L)
    b2 = rows_ref[2:3, :out_dim]                             # (1, Fout)

    # h = ELU(s @ W1a + a * w1b + b1); dense part on the MXU (bf16 operands,
    # f32 accumulation), degenerate action column on the VPU.
    h = jnp.dot(s.astype(w1a_ref.dtype), w1a_ref[...],
                preferred_element_type=jnp.float32)
    h = h + a * w1b + b1
    # ELU(alpha=1).  exp(x)-1 kept (guaranteed Mosaic lowering); the negative
    # branch only, so no overflow concern.  TODO(synk): switch to expm1 when
    # Mosaic lowering is confirmed, for better precision near 0^-.
    h = jnp.where(h > 0, h, jnp.exp(h) - 1.0)

    # out = ELU(h @ W2 + b2)
    o = jnp.dot(h.astype(w2_ref.dtype), w2_ref[...],
                preferred_element_type=jnp.float32) + b2
    out_ref[...] = jnp.where(o > 0, o, jnp.exp(o) - 1.0).astype(out_ref.dtype)


def prepare_params(w1, b1, w2, b2, *, features_dim, weight_dtype=jnp.bfloat16):
    """One-time preprocessing from PyTorch nn.Linear layout.

    w1: (L, F+A), b1: (L,), w2: (Fout, L), b2: (Fout,)  (A = action_dim = 1)
    Returns (w1a (F, L) weight_dtype, rows (3, max(L,Fout)) f32, w2t (L, Fout) weight_dtype).
    """
    L = w1.shape[0]
    Fout = w2.shape[0]
    w1_t = jnp.asarray(w1).T                                   # (F+A, L)
    w1a = w1_t[:features_dim].astype(weight_dtype)             # (F, L)   MXU operand
    w1b = w1_t[features_dim:features_dim + 1].astype(jnp.float32)  # (1, L) action row
    w2t = jnp.asarray(w2).T.astype(weight_dtype)               # (L, Fout) MXU operand
    n = max(L, Fout)
    rows = jnp.zeros((3, n), jnp.float32)
    rows = rows.at[0, :L].set(w1b[0])
    rows = rows.at[1, :L].set(jnp.asarray(b1, jnp.float32))
    rows = rows.at[2, :Fout].set(jnp.asarray(b2, jnp.float32))
    return w1a, rows, w2t


def state_predictor(last_encoded_state, action, w1a, rows, w2,
                    *, block_b=256, out_dtype=jnp.float32):
    """last_encoded_state: (B, F) f32; action: (B,) or (B, 1).

    w1a: (F, L) bf16, rows: (3, max(L,Fout)) f32 = [w1b; b1; b2], w2: (L, Fout) bf16.
    out_dtype=jnp.bfloat16 halves output HBM traffic if the consumer tolerates it.
    """
    B, F = last_encoded_state.shape
    L = w1a.shape[1]
    Fout = w2.shape[1]

    # torch: action.detach().view(-1, 1)
    action = action.reshape(B, 1).astype(jnp.float32)
    state = last_encoded_state.astype(jnp.float32)

    # Tile selection: >=256 rows fills the v6e/v7x MXU; small B gets a single
    # (sublane-rounded) block instead of over-splitting a latency-bound call.
    block_b = max(8, _round_up(block_b, 8))
    tb = _round_up(B, 8) if B <= block_b else block_b

    # Pad B up to a multiple of the tile: never collapse to one giant block,
    # keep pipelining and (v7x) dual-TensorCore sharding for any B.
    B_pad = _round_up(B, tb)
    if B_pad != B:
        state = jnp.pad(state, ((0, B_pad - B), (0, 0)))
        action = jnp.pad(action, ((0, B_pad - B), (0, 0)))
    grid = (B_pad // tb,)

    # Action column: resident (one DMA total) unless the padded column (which
    # pads to 128 lanes in VMEM) would be too large; then stream per tile.
    action_resident = (B_pad * 128 * 4) <= (8 << 20)
    if action_resident:
        a_spec = pl.BlockSpec((B_pad, 1), lambda i: (0, 0))
    else:
        a_spec = pl.BlockSpec((tb, 1), lambda i: (i, 0))

    kernel = functools.partial(
        _state_predictor_kernel, tb=tb, latent_dim=L, out_dim=Fout,
        action_resident=action_resident)

    # Advisory scheduling hint for XLA.
    itemsize_w = jnp.dtype(w1a.dtype).itemsize
    cost = pl.CostEstimate(
        flops=2 * B_pad * F * L + 2 * B_pad * L * Fout,
        transcendentals=B_pad * (L + Fout),
        bytes_accessed=(state.size * 4 + action.size * 4
                        + w1a.size * itemsize_w + w2.size * itemsize_w
                        + rows.size * 4 + B_pad * Fout * jnp.dtype(out_dtype).itemsize))

    # Only raise the scoped-VMEM limit if very large tiles would exceed the
    # default budget (16 MiB on v5e); the recommended 256-512 tiles fit easily.
    vmem_est = (2 * (tb * F * 4 + tb * Fout * 4)                       # in/out, double-buffered
                + 2 * (w1a.size + w2.size) * itemsize_w                 # resident weights
                + 2 * 8 * max(rows.shape[1], 128) * 4                   # packed row slab
                + (B_pad if action_resident else 2 * tb) * 128 * 4)     # action column
    vmem_limit = None
    if vmem_est > (14 << 20):
        vmem_limit = min(_round_up(vmem_est + (4 << 20), 1 << 20), 100 << 20)

    out = pl.pallas_call(
        kernel,
        out_shape=jax.ShapeDtypeStruct((B_pad, Fout), out_dtype),
        grid=grid,
        in_specs=[
            pl.BlockSpec((tb, F), lambda i: (i, 0)),      # state tile (streamed)
            a_spec,                                        # action column
            pl.BlockSpec((F, L), lambda i: (0, 0)),        # W1a (resident)
            pl.BlockSpec(rows.shape, lambda i: (0, 0)),    # [w1b; b1; b2] (resident)
            pl.BlockSpec((L, Fout), lambda i: (0, 0)),     # W2 (resident)
        ],
        out_specs=pl.BlockSpec((tb, Fout), lambda i: (i, 0)),
        compiler_params=pltpu.CompilerParams(
            dimension_semantics=("parallel",),             # megacore over batch blocks
            vmem_limit_bytes=vmem_limit,
        ),
        cost_estimate=cost,
    )(state, action, w1a, rows, w2)

    return out[:B] if B_pad != B else out


if __name__ == "__main__":
    # Module defaults: features_dim=256, latent_dim=256, action_dim=1.
    # B chosen not a multiple of 8 or of the 256-row tile, to exercise the
    # padding path and a multi-block grid (520 -> padded 768 -> grid of 3).
    B, F, L = 520, 256, 256

    key = jax.random.PRNGKey(0)
    ks = jax.random.split(key, 6)

    last_encoded_state = jax.random.normal(ks[0], (B, F), dtype=jnp.float32)
    action = jax.random.normal(ks[1], (B,), dtype=jnp.float32)

    # Deterministic synthetic parameters in PyTorch nn.Linear layout.
    fan_in1 = F + 1
    w1 = jax.random.normal(ks[2], (L, fan_in1), jnp.float32) / jnp.sqrt(1.0 * fan_in1)
    b1 = jax.random.normal(ks[3], (L,), jnp.float32) * 0.01
    w2 = jax.random.normal(ks[4], (F, L), jnp.float32) / jnp.sqrt(1.0 * L)
    b2 = jax.random.normal(ks[5], (F,), jnp.float32) * 0.01

    # One-time parameter preprocessing (setup-time, not per call).
    w1a, rows, w2t = prepare_params(w1, b1, w2, b2, features_dim=F)

    out = state_predictor(last_encoded_state, action, w1a, rows, w2t, block_b=256)
    jax.block_until_ready(out)
    assert out.shape == (B, F) and out.dtype == jnp.float32

    # Reference 1: identical mixed-precision path (tight tolerance).
    a2d = action.reshape(-1, 1)
    h_ref = jnp.dot(last_encoded_state.astype(jnp.bfloat16), w1a,
                    preferred_element_type=jnp.float32)
    h_ref = h_ref + a2d * rows[0:1, :L] + rows[1:2, :L]
    h_ref = jnp.where(h_ref > 0, h_ref, jnp.exp(h_ref) - 1.0)
    o_ref = jnp.dot(h_ref.astype(jnp.bfloat16), w2t,
                    preferred_element_type=jnp.float32) + rows[2:3, :F]
    ref = jnp.where(o_ref > 0, o_ref, jnp.exp(o_ref) - 1.0)
    assert jnp.allclose(out, ref, atol=2e-3, rtol=2e-3), (
        float(jnp.max(jnp.abs(out - ref))))

    # Reference 2: full-f32 PyTorch semantics (documents the bf16 fidelity drift).
    x = jnp.concatenate([last_encoded_state, a2d], axis=1)
    h32 = jax.nn.elu(x @ w1.T + b1)
    ref32 = jax.nn.elu(h32 @ w2.T + b2)
    assert jnp.allclose(out, ref32, atol=5e-2, rtol=5e-2), (
        float(jnp.max(jnp.abs(out - ref32))))

    print("KERNEL_OK")
</pallas_src>

<mosaic_0001>
module attributes {stable_mosaic.version = 11 : i64} {
  func.func @_state_predictor_kernel(%arg0: i32, %arg1: memref<256x256xf32, #tpu.memory_space<vmem>>, %arg2: memref<768x1xf32, #tpu.memory_space<vmem>>, %arg3: memref<256x256xbf16, #tpu.memory_space<vmem>>, %arg4: memref<3x256xf32, #tpu.memory_space<vmem>>, %arg5: memref<256x256xbf16, #tpu.memory_space<vmem>>, %arg6: memref<256x256xf32, #tpu.memory_space<vmem>>) attributes {dimension_semantics = [#tpu.dimension_semantics<parallel>], iteration_bounds = array<i64: 3>, scalar_prefetch = 0 : i64, scratch_operands = 0 : i64, tpu.core_type = #tpu.core_type<tc>, window_params = [{transform_indices = @transform_0, window_bounds = array<i64: 256, 256>}, {pipeline_mode = #tpu.pipeline_mode<synchronous>, transform_indices = @transform_1, window_bounds = array<i64: 768, 1>}, {pipeline_mode = #tpu.pipeline_mode<synchronous>, transform_indices = @transform_2, window_bounds = array<i64: 256, 256>}, {pipeline_mode = #tpu.pipeline_mode<synchronous>, transform_indices = @transform_3, window_bounds = array<i64: 3, 256>}, {pipeline_mode = #tpu.pipeline_mode<synchronous>, transform_indices = @transform_4, window_bounds = array<i64: 256, 256>}, {transform_indices = @transform_5, window_bounds = array<i64: 256, 256>}]} {
    %c0 = arith.constant 0 : index
    %c0_0 = arith.constant 0 : index
    %0 = vector.load %arg1[%c0, %c0_0] : memref<256x256xf32, #tpu.memory_space<vmem>>, vector<256x256xf32>
    %c256_i32 = arith.constant 256 : i32
    %1 = arith.muli %arg0, %c256_i32 : i32
    %2 = tpu.assume_multiple %1, 256 : i32
    %3 = arith.index_cast %2 : i32 to index
    %c0_1 = arith.constant 0 : index
    %4 = vector.load %arg2[%3, %c0_1] : memref<768x1xf32, #tpu.memory_space<vmem>>, vector<256x1xf32>
    %c0_2 = arith.constant 0 : index
    %c0_3 = arith.constant 0 : index
    %5 = vector.load %arg4[%c0_2, %c0_3] : memref<3x256xf32, #tpu.memory_space<vmem>>, vector<1x256xf32>
    %c1 = arith.constant 1 : index
    %c0_4 = arith.constant 0 : index
    %6 = vector.load %arg4[%c1, %c0_4] : memref<3x256xf32, #tpu.memory_space<vmem>>, vector<1x256xf32>
    %c2 = arith.constant 2 : index
    %c0_5 = arith.constant 0 : index
    %7 = vector.load %arg4[%c2, %c0_5] : memref<3x256xf32, #tpu.memory_space<vmem>>, vector<1x256xf32>
    %8 = arith.truncf %0 : vector<256x256xf32> to vector<256x256xbf16>
    %c0_6 = arith.constant 0 : index
    %c0_7 = arith.constant 0 : index
    %9 = vector.load %arg3[%c0_6, %c0_7] : memref<256x256xbf16, #tpu.memory_space<vmem>>, vector<256x256xbf16>
    %cst = arith.constant dense<0.000000e+00> : vector<256x256xf32>
    %10 = tpu.matmul %8, %9, %cst {dimension_numbers = #tpu.dot_dimension_numbers<[1], [0], [0], [1], [0, 0, 1, 1], [], []>} : vector<256x256xbf16>, vector<256x256xbf16>, vector<256x256xf32> -> vector<256x256xf32>
    %11 = vector.broadcast %4 : vector<256x1xf32> to vector<256x256xf32>
    %12 = vector.broadcast %5 : vector<1x256xf32> to vector<256x256xf32>
    %13 = arith.mulf %11, %12 : vector<256x256xf32>
    %14 = arith.addf %10, %13 : vector<256x256xf32>
    %15 = vector.broadcast %6 : vector<1x256xf32> to vector<256x256xf32>
    %16 = arith.addf %14, %15 : vector<256x256xf32>
    %cst_8 = arith.constant 0.000000e+00 : f32
    %17 = vector.broadcast %cst_8 : f32 to vector<256x256xf32>
    %18 = arith.cmpf ogt, %16, %17 : vector<256x256xf32>
    %19 = math.exp %16 : vector<256x256xf32>
    %cst_9 = arith.constant 1.000000e+00 : f32
    %20 = vector.broadcast %cst_9 : f32 to vector<256x256xf32>
    %21 = arith.subf %19, %20 : vector<256x256xf32>
    %22 = arith.select %18, %16, %21 : vector<256x256xi1>, vector<256x256xf32>
    %23 = arith.truncf %22 : vector<256x256xf32> to vector<256x256xbf16>
    %c0_10 = arith.constant 0 : index
    %c0_11 = arith.constant 0 : index
    %24 = vector.load %arg5[%c0_10, %c0_11] : memref<256x256xbf16, #tpu.memory_space<vmem>>, vector<256x256xbf16>
    %cst_12 = arith.constant dense<0.000000e+00> : vector<256x256xf32>
    %25 = tpu.matmul %23, %24, %cst_12 {dimension_numbers = #tpu.dot_dimension_numbers<[1], [0], [0], [1], [0, 0, 1, 1], [], []>} : vector<256x256xbf16>, vector<256x256xbf16>, vector<256x256xf32> -> vector<256x256xf32>
    %26 = vector.broadcast %7 : vector<1x256xf32> to vector<256x256xf32>
    %27 = arith.addf %25, %26 : vector<256x256xf32>
    %cst_13 = arith.constant 0.000000e+00 : f32
    %28 = vector.broadcast %cst_13 : f32 to vector<256x256xf32>
    %29 = arith.cmpf ogt, %27, %28 : vector<256x256xf32>
    %30 = math.exp %27 : vector<256x256xf32>
    %cst_14 = arith.constant 1.000000e+00 : f32
    %31 = vector.broadcast %cst_14 : f32 to vector<256x256xf32>
    %32 = arith.subf %30, %31 : vector<256x256xf32>
    %33 = arith.select %29, %27, %32 : vector<256x256xi1>, vector<256x256xf32>
    %c0_15 = arith.constant 0 : index
    %c0_16 = arith.constant 0 : index
    %34 = vector.load %arg6[%c0_15, %c0_16] : memref<256x256xf32, #tpu.memory_space<vmem>>, vector<256x256xf32>
    tpu.vector_store %arg6[%c0_15, %c0_16], %33 {strides = array<i32>} : memref<256x256xf32, #tpu.memory_space<vmem>>, vector<256x256xf32>,
    return
  }
  func.func @transform_0(%arg0: i32) -> (i32, i32) {
    %c0_i32 = arith.constant 0 : i32
    %c0_i32_0 = arith.constant 0 : i32
    return %arg0, %c0_i32 : i32, i32
  }
  func.func @transform_1(%arg0: i32) -> (i32, i32) {
    %c0_i32 = arith.constant 0 : i32
    %c0_i32_0 = arith.constant 0 : i32
    %c0_i32_1 = arith.constant 0 : i32
    return %c0_i32, %c0_i32_0 : i32, i32
  }
  func.func @transform_2(%arg0: i32) -> (i32, i32) {
    %c0_i32 = arith.constant 0 : i32
    %c0_i32_0 = arith.constant 0 : i32
    %c0_i32_1 = arith.constant 0 : i32
    return %c0_i32, %c0_i32_0 : i32, i32
  }
  func.func @transform_3(%arg0: i32) -> (i32, i32) {
    %c0_i32 = arith.constant 0 : i32
    %c0_i32_0 = arith.constant 0 : i32
    %c0_i32_1 = arith.constant 0 : i32
    return %c0_i32, %c0_i32_0 : i32, i32
  }
  func.func @transform_4(%arg0: i32) -> (i32, i32) {
    %c0_i32 = arith.constant 0 : i32
    %c0_i32_0 = arith.constant 0 : i32
    %c0_i32_1 = arith.constant 0 : i32
    return %c0_i32, %c0_i32_0 : i32, i32
  }
  func.func @transform_5(%arg0: i32) -> (i32, i32) {
    %c0_i32 = arith.constant 0 : i32
    %c0_i32_0 = arith.constant 0 : i32
    return %arg0, %c0_i32 : i32, i32
  }
}

</mosaic_0001>

<llo_original>
// kernel: tpu_custom_call.1
$region0: #{tpu_custom_call.1}
  #allocation0 [shape = 'u32[]', space=smem, size = 0x4, offset = 0x4, fixed_abs, tag = 'smem constant byte address 0x4 - core index']
  #allocation1 [shape = 'u32[144,128]{1,0:T(1,128)}', space=vmem, size = 0x12000, scoped, tag = 'internal scratch']
  %s0 = inlined_call_operand.hbm [shape: f32[768,256], index: 0, kind: input, shape index: {}]
  %s1 = inlined_call_operand.vmem [shape: f32[768,1], index: 1, kind: input, shape index: {}]
  %s2 = inlined_call_operand.vmem [shape: bf16[256,256], index: 2, kind: input, shape index: {}]
  %s3 = inlined_call_operand.vmem [shape: f32[3,256], index: 3, kind: input, shape index: {}]
  %s4 = inlined_call_operand.vmem [shape: bf16[256,256], index: 4, kind: input, shape index: {}]
  %s5 = inlined_call_operand.hbm [shape: f32[768,256], index: 5, kind: output, shape index: {}]
  %s6 = sld [smem:[#allocation0]]
  $region57: #{tpu_custom_call.1} parent=0
    _
  %s8 = ssub.s32 1, %s6
  %s9 = scalar_select 0, %s8, %s6
  $region1: #{tpu_custom_call.1} parent=0
    #allocation2 [shape = 'u8[524288]{0}', space=vmem, size = 0x80000, scoped, tag = 'input window, operand 0']
    #allocation3 [shape = 's32[2]{0}', space=sflag, size = 0x8, scoped, tag = 'scoped memory for tpu_custom_call.1']
    #allocation4 [shape = 's32[2]{0}', space=sflag, size = 0x8, scoped, tag = 'scoped memory for tpu_custom_call.1']
    #allocation5 [shape = 'u8[524288]{0}', space=vmem, size = 0x80000, scoped, tag = 'output window, operand 0']
    %10 = vsyncpa [#allocation3], 0
    %s11 = scalar_lea.sflag [#allocation3], 1
    %12 = vsyncpa %s11, 0
    %13 = vsyncpa [#allocation4], 0
    %s14 = scalar_lea.sflag [#allocation4], 1
    %15 = vsyncpa %s14, 0
    loop: start=0, step=1, limit=5
    $region2: #{tpu_custom_call.1} parent=1 // loop_pre_header
      _
    $region3: #{tpu_custom_call.1} parent=1 // loop_header
      %s17 = sphi 0, %s21
      %p18 = scmp.ge.s32.totalorder %s17, 5
      %s27 = sphi 0, %s29
      %s30 = sphi 0, %s27
      %s31 = sphi 0, %s30
      %s47 = sphi 0, %s31
      %s51 = sphi 0, %s51
      %s53 = sphi 0, %s51
      %s54 = sphi 0, %s53
      %s68 = sphi 0, %s54
      %s72 = sphi 0, %s72
      %s74 = sphi 0, %s72
      %s75 = sphi 0, %s74
      %s89 = sphi 0, %s75
      %s93 = sphi 0, %s93
      %s95 = sphi 0, %s93
      %s96 = sphi 0, %s95
      %s110 = sphi 0, %s96
      %s114 = sphi 0, %s114
      %s116 = sphi 0, %s114
      %s117 = sphi 0, %s116
      %s131 = sphi 0, %s117
      %s137 = sphi 0, %s139
      %s140 = sphi 0, %s137
      %s141 = sphi 0, %s140
      %s157 = sphi 0, %s141
    $region4: #{tpu_custom_call.1} parent=1 // loop_header_branch
      %20 = sbr.rel (%p18) target = $region8
    $region5: #{tpu_custom_call.1} parent=1 // loop_body
      %s22 = ssub.s32 %s17, 1
      %s23 = ssub.s32 %s17, 2
      %s24 = sadd.s32 %s17, 1
      %s25 = ssub.s32 %s17, %s24
      %p26 = scmp.eq.s32.totalorder %s25, 0
      %s28 = sadd.s32 %s27, 1
      %s29 = scalar_select %p26, %s27, %s28
      %p32 = pneg %p26
      %p33 = scmp.eq.s32.totalorder %s17, 2
      %p34 = por %p32, %p33
      %p35 = scmp.ne.s32.totalorder %s27, %s30
      %p36 = scmp.eq.s32.totalorder %s17, 0
      %p37 = por %p35, %p36
      %p38 = scmp.ne.s32.totalorder %s27, %s30
      %p39 = scmp.eq.s32.totalorder %s22, 2
      %p40 = por %p38, %p39
      %p41 = scmp.ne.s32.totalorder %s30, %s31
      %p42 = scmp.eq.s32.totalorder %s22, 0
      %p43 = por %p41, %p42
      %p44 = scmp.ne.s32.totalorder %s30, %s31
      %p45 = scmp.eq.s32.totalorder %s23, 2
      %p46 = por %p44, %p45
      %p48 = scmp.ne.s32.totalorder %s31, %s47
      %p49 = scmp.eq.s32.totalorder %s23, 0
      %p50 = por %p48, %p49
      %s52 = sadd.s32 %s51, 1
      %p55 = scmp.eq.s32.totalorder %s17, 2
      %p56 = scmp.ne.s32.totalorder %s51, %s53
      %p57 = scmp.eq.s32.totalorder %s17, 0
      %p58 = por %p56, %p57
      %p59 = scmp.ne.s32.totalorder %s51, %s53
      %p60 = scmp.eq.s32.totalorder %s22, 2
      %p61 = por %p59, %p60
      %p62 = scmp.ne.s32.totalorder %s53, %s54
      %p63 = scmp.eq.s32.totalorder %s22, 0
      %p64 = por %p62, %p63
      %p65 = scmp.ne.s32.totalorder %s53, %s54
      %p66 = scmp.eq.s32.totalorder %s23, 2
      %p67 = por %p65, %p66
      %p69 = scmp.ne.s32.totalorder %s54, %s68
      %p70 = scmp.eq.s32.totalorder %s23, 0
      %p71 = por %p69, %p70
      %s73 = sadd.s32 %s72, 1
      %p76 = scmp.eq.s32.totalorder %s17, 2
      %p77 = scmp.ne.s32.totalorder %s72, %s74
      %p78 = scmp.eq.s32.totalorder %s17, 0
      %p79 = por %p77, %p78
      %p80 = scmp.ne.s32.totalorder %s72, %s74
      %p81 = scmp.eq.s32.totalorder %s22, 2
      %p82 = por %p80, %p81
      %p83 = scmp.ne.s32.totalorder %s74, %s75
      %p84 = scmp.eq.s32.totalorder %s22, 0
      %p85 = por %p83, %p84
      %p86 = scmp.ne.s32.totalorder %s74, %s75
      %p87 = scmp.eq.s32.totalorder %s23, 2
      %p88 = por %p86, %p87
      %p90 = scmp.ne.s32.totalorder %s75, %s89
      %p91 = scmp.eq.s32.totalorder %s23, 0
      %p92 = por %p90, %p91
      %s94 = sadd.s32 %s93, 1
      %p97 = scmp.eq.s32.totalorder %s17, 2
      %p98 = scmp.ne.s32.totalorder %s93, %s95
      %p99 = scmp.eq.s32.totalorder %s17, 0
      %p100 = por %p98, %p99
      %p101 = scmp.ne.s32.totalorder %s93, %s95
      %p102 = scmp.eq.s32.totalorder %s22, 2
      %p103 = por %p101, %p102
      %p104 = scmp.ne.s32.totalorder %s95, %s96
      %p105 = scmp.eq.s32.totalorder %s22, 0
      %p106 = por %p104, %p105
      %p107 = scmp.ne.s32.totalorder %s95, %s96
      %p108 = scmp.eq.s32.totalorder %s23, 2
      %p109 = por %p107, %p108
      %p111 = scmp.ne.s32.totalorder %s96, %s110
      %p112 = scmp.eq.s32.totalorder %s23, 0
      %p113 = por %p111, %p112
      %s115 = sadd.s32 %s114, 1
      %p118 = scmp.eq.s32.totalorder %s17, 2
      %p119 = scmp.ne.s32.totalorder %s114, %s116
      %p120 = scmp.eq.s32.totalorder %s17, 0
      %p121 = por %p119, %p120
      %p122 = scmp.ne.s32.totalorder %s114, %s116
      %p123 = scmp.eq.s32.totalorder %s22, 2
      %p124 = por %p122, %p123
      %p125 = scmp.ne.s32.totalorder %s116, %s117
      %p126 = scmp.eq.s32.totalorder %s22, 0
      %p127 = por %p125, %p126
      %p128 = scmp.ne.s32.totalorder %s116, %s117
      %p129 = scmp.eq.s32.totalorder %s23, 2
      %p130 = por %p128, %p129
      %p132 = scmp.ne.s32.totalorder %s117, %s131
      %p133 = scmp.eq.s32.totalorder %s23, 0
      %p134 = por %p132, %p133
      %s135 = ssub.s32 %s17, %s24
      %p136 = scmp.eq.s32.totalorder %s135, 0
      %s138 = sadd.s32 %s137, 1
      %s139 = scalar_select %p136, %s137, %s138
      %p142 = pneg %p136
      %p143 = scmp.eq.s32.totalorder %s17, 2
      %p144 = por %p142, %p143
      %p145 = scmp.ne.s32.totalorder %s137, %s140
      %p146 = scmp.eq.s32.totalorder %s17, 0
      %p147 = por %p145, %p146
      %p148 = scmp.ne.s32.totalorder %s137, %s140
      %p149 = scmp.eq.s32.totalorder %s22, 2
      %p150 = por %p148, %p149
      %p151 = scmp.ne.s32.totalorder %s140, %s141
      %p152 = scmp.eq.s32.totalorder %s22, 0
      %p153 = por %p151, %p152
      %p154 = scmp.ne.s32.totalorder %s140, %s141
      %p155 = scmp.eq.s32.totalorder %s23, 2
      %p156 = por %p154, %p155
      %p158 = scmp.ne.s32.totalorder %s141, %s157
      %p159 = scmp.eq.s32.totalorder %s23, 0
      %p160 = por %p158, %p159
      %p161 = scmp.le.s32.totalorder 1, %s17
      %p162 = scmp.lt.s32.totalorder %s17, 4
      %p163 = pnand %p161, %p162
      %p164 = pneg %p163
      // Predicated region
      $region9: #{tpu_custom_call.1} parent=5 // pred_check
        _
      $region10: #{tpu_custom_call.1} parent=5 // pred_check_branch
        %166 = sbr.rel (%p163) target = $region12
      $region11: #{tpu_custom_call.1} parent=5 // pred_region
        %s167 = ssub.s32 %s17, 1
        // Predicated region
        $region13: #{tpu_custom_call.1} parent=11 // pred_check
          %p168 = pneg %p64
        $region14: #{tpu_custom_call.1} parent=11 // pred_check_branch
          %170 = sbr.rel (%p168) target = $region16
        $region15: #{tpu_custom_call.1} parent=11 // pred_region
          _
        $region16: #{tpu_custom_call.1} parent=11 // pred_fallthru
          _
        // Predicated region
        $region17: #{tpu_custom_call.1} parent=11 // pred_check
          %p171 = pneg %p85
        $region18: #{tpu_custom_call.1} parent=11 // pred_check_branch
          %173 = sbr.rel (%p171) target = $region20
        $region19: #{tpu_custom_call.1} parent=11 // pred_region
          _
        $region20: #{tpu_custom_call.1} parent=11 // pred_fallthru
          _
        // Predicated region
        $region21: #{tpu_custom_call.1} parent=11 // pred_check
          %p174 = pneg %p106
        $region22: #{tpu_custom_call.1} parent=11 // pred_check_branch
          %176 = sbr.rel (%p174) target = $region24
        $region23: #{tpu_custom_call.1} parent=11 // pred_region
          _
        $region24: #{tpu_custom_call.1} parent=11 // pred_fallthru
          _
        // Predicated region
        $region25: #{tpu_custom_call.1} parent=11 // pred_check
          %p177 = pneg %p127
        $region26: #{tpu_custom_call.1} parent=11 // pred_check_branch
          %179 = sbr.rel (%p177) target = $region28
        $region27: #{tpu_custom_call.1} parent=11 // pred_region
          _
        $region28: #{tpu_custom_call.1} parent=11 // pred_fallthru
          _
      $region12: #{tpu_custom_call.1} parent=5 // pred_fallthru
        _
      %p180 = scmp.lt.s32.totalorder %s17, 3
      // Predicated region
      $region29: #{tpu_custom_call.1} parent=5 // pred_check
        %p181 = pneg %p180
      $region30: #{tpu_custom_call.1} parent=5 // pred_check_branch
        %183 = sbr.rel (%p181) target = $region32
      $region31: #{tpu_custom_call.1} parent=5 // pred_region
        // Predicated region
        $region33: #{tpu_custom_call.1} parent=31 // pred_check
          %p184 = pneg %p37
        $region34: #{tpu_custom_call.1} parent=31 // pred_check_branch
          %186 = sbr.rel (%p184) target = $region36
        $region35: #{tpu_custom_call.1} parent=31 // pred_region
          %s187 = sand.u32 %s27, 1
          %s188 = scalar_lea.sflag [#allocation3], %s187
          %s189 = sand.u32 %s27, 1
          %s190 = smul.addr %s189, 512
          %s191 = scalar_lea.vmem [#allocation2], %s190
          %s192 = smul.u32 32, %s17
          %s194 = ssub.s32 8192, 8192
          %195 = vsyncadd %s188, %s194
          %s196 = smul.addr %s192, 2
          %s197 = smul.addr %s196, 128
          %s198 = scalar_lea.hbm %s0, %s197
          %s199 = sshll.u32 %s191, 4
          %s200 = int_to_ptr.vmem [resolvable:$true] %s199
          %205 = dma.hbm_to_vmem [thread:$0]  %s198, 8192, %s200, %s188, 256, 256, 16
        $region36: #{tpu_custom_call.1} parent=31 // pred_fallthru
          _
      $region32: #{tpu_custom_call.1} parent=5 // pred_fallthru
        _
      %p206 = scmp.le.s32.totalorder 1, %s17
      %p207 = scmp.lt.s32.totalorder %s17, 4
      %p208 = pnand %p206, %p207
      %p209 = pneg %p208
      // Predicated region
      $region37: #{tpu_custom_call.1} parent=5 // pred_check
        _
      $region38: #{tpu_custom_call.1} parent=5 // pred_check_branch
        %211 = sbr.rel (%p208) target = $region40
      $region39: #{tpu_custom_call.1} parent=5 // pred_region
        %s212 = ssub.s32 %s17, 1
        %s213 = sand.u32 %s30, 1
        %s214 = scalar_lea.sflag [#allocation3], %s213
        %s215 = sand.u32 %s30, 1
        %s216 = smul.addr %s215, 512
        %s217 = scalar_lea.vmem [#allocation2], %s216
        // Predicated region
        $region41: #{tpu_custom_call.1} parent=39 // pred_check
          %p218 = pneg %p43
        $region42: #{tpu_custom_call.1} parent=39 // pred_check_branch
          %220 = sbr.rel (%p218) target = $region44
        $region43: #{tpu_custom_call.1} parent=39 // pred_region
          %221 = dma.done %s214, 8192
        $region44: #{tpu_custom_call.1} parent=39 // pred_fallthru
          _
        %s222 = sand.u32 %s30, 1
        %s223 = scalar_lea.sflag [#allocation3], %s222
        %s224 = sand.u32 %s30, 1
        %s225 = smul.addr %s224, 512
        %s226 = scalar_lea.vmem [#allocation2], %s225
        %p227 = pneg %p43
        %p228 = pneg %p40
        %p229 = pneg %p64
        %p230 = pneg %p61
        %p231 = pneg %p85
        %p232 = pneg %p82
        %p233 = pneg %p106
        %p234 = pneg %p103
        %p235 = pneg %p127
        %p236 = pneg %p124
        %p237 = pneg %p153
        %p238 = pneg %p150
        %s239 = sand.u32 %s140, 1
        %s240 = scalar_lea.sflag [#allocation4], %s239
        %s241 = sand.u32 %s140, 1
        %s242 = smul.addr %s241, 512
        %s243 = scalar_lea.vmem [#allocation5], %s242
        %s244 = smul.u32 32, %s22
        %s245 = smul.u32 32, %s22
        %v246 = vld [vmem:[%s217] sm:$0xff]
        %v247 = vld [vmem:[%s217 + $0x8] sm:$0xff]
        %v248 = vld [vmem:[%s217 + $0x10] sm:$0xff]
        %v249 = vld [vmem:[%s217 + $0x18] sm:$0xff]
        %v250 = vld [vmem:[%s217 + $0x20] sm:$0xff]
        %v251 = vld [vmem:[%s217 + $0x28] sm:$0xff]
        %v252 = vld [vmem:[%s217 + $0x30] sm:$0xff]
        %v253 = vld [vmem:[%s217 + $0x38] sm:$0xff]
        %v254 = vld [vmem:[%s217 + $0x40] sm:$0xff]
        %v255 = vld [vmem:[%s217 + $0x48] sm:$0xff]
        %v256 = vld [vmem:[%s217 + $0x50] sm:$0xff]
        %v257 = vld [vmem:[%s217 + $0x58] sm:$0xff]
        %v258 = vld [vmem:[%s217 + $0x60] sm:$0xff]
        %v259 = vld [vmem:[%s217 + $0x68] sm:$0xff]
        %v260 = vld [vmem:[%s217 + $0x70] sm:$0xff]
        %v261 = vld [vmem:[%s217 + $0x78] sm:$0xff]
        %v262 = vld [vmem:[%s217 + $0x80] sm:$0xff]
        %v263 = vld [vmem:[%s217 + $0x88] sm:$0xff]
        %v264 = vld [vmem:[%s217 + $0x90] sm:$0xff]
        %v265 = vld [vmem:[%s217 + $0x98] sm:$0xff]
        %v266 = vld [vmem:[%s217 + $0xa0] sm:$0xff]
        %v267 = vld [vmem:[%s217 + $0xa8] sm:$0xff]
        %v268 = vld [vmem:[%s217 + $0xb0] sm:$0xff]
        %v269 = vld [vmem:[%s217 + $0xb8] sm:$0xff]
        %v270 = vld [vmem:[%s217 + $0xc0] sm:$0xff]
        %v271 = vld [vmem:[%s217 + $0xc8] sm:$0xff]
        %v272 = vld [vmem:[%s217 + $0xd0] sm:$0xff]
        %v273 = vld [vmem:[%s217 + $0xd8] sm:$0xff]
        %v274 = vld [vmem:[%s217 + $0xe0] sm:$0xff]
        %v275 = vld [vmem:[%s217 + $0xe8] sm:$0xff]
        %v276 = vld [vmem:[%s217 + $0xf0] sm:$0xff]
        %v277 = vld [vmem:[%s217 + $0xf8] sm:$0xff]
        %v278 = vld [vmem:[%s217 + $0x100] sm:$0xff]
        %v279 = vld [vmem:[%s217 + $0x108] sm:$0xff]
        %v280 = vld [vmem:[%s217 + $0x110] sm:$0xff]
        %v281 = vld [vmem:[%s217 + $0x118] sm:$0xff]
        %v282 = vld [vmem:[%s217 + $0x120] sm:$0xff]
        %v283 = vld [vmem:[%s217 + $0x128] sm:$0xff]
        %v284 = vld [vmem:[%s217 + $0x130] sm:$0xff]
        %v285 = vld [vmem:[%s217 + $0x138] sm:$0xff]
        %v286 = vld [vmem:[%s217 + $0x140] sm:$0xff]
        %v287 = vld [vmem:[%s217 + $0x148] sm:$0xff]
        %v288 = vld [vmem:[%s217 + $0x150] sm:$0xff]
        %v289 = vld [vmem:[%s217 + $0x158] sm:$0xff]
        %v290 = vld [vmem:[%s217 + $0x160] sm:$0xff]
        %v291 = vld [vmem:[%s217 + $0x168] sm:$0xff]
        %v292 = vld [vmem:[%s217 + $0x170] sm:$0xff]
        %v293 = vld [vmem:[%s217 + $0x178] sm:$0xff]
        %v294 = vld [vmem:[%s217 + $0x180] sm:$0xff]
        %v295 = vld [vmem:[%s217 + $0x188] sm:$0xff]
        %v296 = vld [vmem:[%s217 + $0x190] sm:$0xff]
        %v297 = vld [vmem:[%s217 + $0x198] sm:$0xff]
        %v298 = vld [vmem:[%s217 + $0x1a0] sm:$0xff]
        %v299 = vld [vmem:[%s217 + $0x1a8] sm:$0xff]
        %v300 = vld [vmem:[%s217 + $0x1b0] sm:$0xff]
        %v301 = vld [vmem:[%s217 + $0x1b8] sm:$0xff]
        %v302 = vld [vmem:[%s217 + $0x1c0] sm:$0xff]
        %v303 = vld [vmem:[%s217 + $0x1c8] sm:$0xff]
        %v304 = vld [vmem:[%s217 + $0x1d0] sm:$0xff]
        %v305 = vld [vmem:[%s217 + $0x1d8] sm:$0xff]
        %v306 = vld [vmem:[%s217 + $0x1e0] sm:$0xff]
        %v307 = vld [vmem:[%s217 + $0x1e8] sm:$0xff]
        %v308 = vld [vmem:[%s217 + $0x1f0] sm:$0xff]
        %v309 = vld [vmem:[%s217 + $0x1f8] sm:$0xff]
        %s310 = smul.u32 %s22, 256
        %s311 = scalar_lea.vmem %s1, %s310
        %v312 = vld [vmem:[%s311] sm:$0xff]
        %v313 = vld [vmem:[%s311 + $0x8] sm:$0xff]
        %v314 = vld [vmem:[%s311 + $0x10] sm:$0xff]
        %v315 = vld [vmem:[%s311 + $0x18] sm:$0xff]
        %v316 = vld [vmem:[%s311 + $0x20] sm:$0xff]
        %v317 = vld [vmem:[%s311 + $0x28] sm:$0xff]
        %v318 = vld [vmem:[%s311 + $0x30] sm:$0xff]
        %v319 = vld [vmem:[%s311 + $0x38] sm:$0xff]
        %v320 = vld [vmem:[%s311 + $0x40] sm:$0xff]
        %v321 = vld [vmem:[%s311 + $0x48] sm:$0xff]
        %v322 = vld [vmem:[%s311 + $0x50] sm:$0xff]
        %v323 = vld [vmem:[%s311 + $0x58] sm:$0xff]
        %v324 = vld [vmem:[%s311 + $0x60] sm:$0xff]
        %v325 = vld [vmem:[%s311 + $0x68] sm:$0xff]
        %v326 = vld [vmem:[%s311 + $0x70] sm:$0xff]
        %v327 = vld [vmem:[%s311 + $0x78] sm:$0xff]
        %v328 = vld [vmem:[%s311 + $0x80] sm:$0xff]
        %v329 = vld [vmem:[%s311 + $0x88] sm:$0xff]
        %v330 = vld [vmem:[%s311 + $0x90] sm:$0xff]
        %v331 = vld [vmem:[%s311 + $0x98] sm:$0xff]
        %v332 = vld [vmem:[%s311 + $0xa0] sm:$0xff]
        %v333 = vld [vmem:[%s311 + $0xa8] sm:$0xff]
        %v334 = vld [vmem:[%s311 + $0xb0] sm:$0xff]
        %v335 = vld [vmem:[%s311 + $0xb8] sm:$0xff]
        %v336 = vld [vmem:[%s311 + $0xc0] sm:$0xff]
        %v337 = vld [vmem:[%s311 + $0xc8] sm:$0xff]
        %v338 = vld [vmem:[%s311 + $0xd0] sm:$0xff]
        %v339 = vld [vmem:[%s311 + $0xd8] sm:$0xff]
        %v340 = vld [vmem:[%s311 + $0xe0] sm:$0xff]
        %v341 = vld [vmem:[%s311 + $0xe8] sm:$0xff]
        %v342 = vld [vmem:[%s311 + $0xf0] sm:$0xff]
        %v343 = vld [vmem:[%s311 + $0xf8] sm:$0xff]
        %v344 = vld [vmem:[%s3] ss:$4 sm:$0x3]
        %s345 = scalar_lea.vmem %s3, 1
        %v346 = vld [vmem:[%s345] ss:$4 sm:$0x3]
        %s347 = scalar_lea.vmem %s3, 2
        %v348 = vld [vmem:[%s347] ss:$4 sm:$0x3]
        %v349 = vpack.c.bf16 %v248, %v246
        %v350 = vpack.c.bf16 %v249, %v247
        %v351 = vpack.c.bf16 %v252, %v250
        %v352 = vpack.c.bf16 %v253, %v251
        %v353 = vpack.c.bf16 %v256, %v254
        %v354 = vpack.c.bf16 %v257, %v255
        %v355 = vpack.c.bf16 %v260, %v258
        %v356 = vpack.c.bf16 %v261, %v259
        %v357 = vpack.c.bf16 %v264, %v262
        %v358 = vpack.c.bf16 %v265, %v263
        %v359 = vpack.c.bf16 %v268, %v266
        %v360 = vpack.c.bf16 %v269, %v267
        %v361 = vpack.c.bf16 %v272, %v270
        %v362 = vpack.c.bf16 %v273, %v271
        %v363 = vpack.c.bf16 %v276, %v274
        %v364 = vpack.c.bf16 %v277, %v275
        %v365 = vpack.c.bf16 %v280, %v278
        %v366 = vpack.c.bf16 %v281, %v279
        %v367 = vpack.c.bf16 %v284, %v282
        %v368 = vpack.c.bf16 %v285, %v283
        %v369 = vpack.c.bf16 %v288, %v286
        %v370 = vpack.c.bf16 %v289, %v287
        %v371 = vpack.c.bf16 %v292, %v290
        %v372 = vpack.c.bf16 %v293, %v291
        %v373 = vpack.c.bf16 %v296, %v294
        %v374 = vpack.c.bf16 %v297, %v295
        %v375 = vpack.c.bf16 %v300, %v298
        %v376 = vpack.c.bf16 %v301, %v299
        %v377 = vpack.c.bf16 %v304, %v302
        %v378 = vpack.c.bf16 %v305, %v303
        %v379 = vpack.c.bf16 %v308, %v306
        %v380 = vpack.c.bf16 %v309, %v307
        %v381 = vld [vmem:[%s2] sm:$0xff]
        %v382 = vld [vmem:[%s2 + $0x8] sm:$0xff]
        %v383 = vld [vmem:[%s2 + $0x10] sm:$0xff]
        %v384 = vld [vmem:[%s2 + $0x18] sm:$0xff]
        %v385 = vld [vmem:[%s2 + $0x20] sm:$0xff]
        %v386 = vld [vmem:[%s2 + $0x28] sm:$0xff]
        %v387 = vld [vmem:[%s2 + $0x30] sm:$0xff]
        %v388 = vld [vmem:[%s2 + $0x38] sm:$0xff]
        %v389 = vld [vmem:[%s2 + $0x40] sm:$0xff]
        %v390 = vld [vmem:[%s2 + $0x48] sm:$0xff]
        %v391 = vld [vmem:[%s2 + $0x50] sm:$0xff]
        %v392 = vld [vmem:[%s2 + $0x58] sm:$0xff]
        %v393 = vld [vmem:[%s2 + $0x60] sm:$0xff]
        %v394 = vld [vmem:[%s2 + $0x68] sm:$0xff]
        %v395 = vld [vmem:[%s2 + $0x70] sm:$0xff]
        %v396 = vld [vmem:[%s2 + $0x78] sm:$0xff]
        %v397 = vld [vmem:[%s2 + $0x80] sm:$0xff]
        %v398 = vld [vmem:[%s2 + $0x88] sm:$0xff]
        %v399 = vld [vmem:[%s2 + $0x90] sm:$0xff]
        %v400 = vld [vmem:[%s2 + $0x98] sm:$0xff]
        %v401 = vld [vmem:[%s2 + $0xa0] sm:$0xff]
        %v402 = vld [vmem:[%s2 + $0xa8] sm:$0xff]
        %v403 = vld [vmem:[%s2 + $0xb0] sm:$0xff]
        %v404 = vld [vmem:[%s2 + $0xb8] sm:$0xff]
        %v405 = vld [vmem:[%s2 + $0xc0] sm:$0xff]
        %v406 = vld [vmem:[%s2 + $0xc8] sm:$0xff]
        %v407 = vld [vmem:[%s2 + $0xd0] sm:$0xff]
        %v408 = vld [vmem:[%s2 + $0xd8] sm:$0xff]
        %v409 = vld [vmem:[%s2 + $0xe0] sm:$0xff]
        %v410 = vld [vmem:[%s2 + $0xe8] sm:$0xff]
        %v411 = vld [vmem:[%s2 + $0xf0] sm:$0xff]
        %v412 = vld [vmem:[%s2 + $0xf8] sm:$0xff]
        %414 = vset.pattern.permute.xlu0 0
        %415 = vperm.xlu0 %414, %v312
        %v416 = vpop.permute.xlu0 %415
        %419 = vset.pattern.permute.xlu0 0
        %420 = vperm.xlu0 %419, %v313
        %v421 = vpop.permute.xlu0 %420
        %424 = vset.pattern.permute.xlu0 0
        %425 = vperm.xlu0 %424, %v314
        %v426 = vpop.permute.xlu0 %425
        %429 = vset.pattern.permute.xlu0 0
        %430 = vperm.xlu0 %429, %v315
        %v431 = vpop.permute.xlu0 %430
        %434 = vset.pattern.permute.xlu0 0
        %435 = vperm.xlu0 %434, %v316
        %v436 = vpop.permute.xlu0 %435
        %439 = vset.pattern.permute.xlu0 0
        %440 = vperm.xlu0 %439, %v317
        %v441 = vpop.permute.xlu0 %440
        %444 = vset.pattern.permute.xlu0 0
        %445 = vperm.xlu0 %444, %v318
        %v446 = vpop.permute.xlu0 %445
        %449 = vset.pattern.permute.xlu0 0
        %450 = vperm.xlu0 %449, %v319
        %v451 = vpop.permute.xlu0 %450
        %454 = vset.pattern.permute.xlu0 0
        %455 = vperm.xlu0 %454, %v320
        %v456 = vpop.permute.xlu0 %455
        %459 = vset.pattern.permute.xlu0 0
        %460 = vperm.xlu0 %459, %v321
        %v461 = vpop.permute.xlu0 %460
        %464 = vset.pattern.permute.xlu0 0
        %465 = vperm.xlu0 %464, %v322
        %v466 = vpop.permute.xlu0 %465
        %469 = vset.pattern.permute.xlu0 0
        %470 = vperm.xlu0 %469, %v323
        %v471 = vpop.permute.xlu0 %470
        %474 = vset.pattern.permute.xlu0 0
        %475 = vperm.xlu0 %474, %v324
        %v476 = vpop.permute.xlu0 %475
        %479 = vset.pattern.permute.xlu0 0
        %480 = vperm.xlu0 %479, %v325
        %v481 = vpop.permute.xlu0 %480
        %484 = vset.pattern.permute.xlu0 0
        %485 = vperm.xlu0 %484, %v326
        %v486 = vpop.permute.xlu0 %485
        %489 = vset.pattern.permute.xlu0 0
        %490 = vperm.xlu0 %489, %v327
        %v491 = vpop.permute.xlu0 %490
        %494 = vset.pattern.permute.xlu0 0
        %495 = vperm.xlu0 %494, %v328
        %v496 = vpop.permute.xlu0 %495
        %499 = vset.pattern.permute.xlu0 0
        %500 = vperm.xlu0 %499, %v329
        %v501 = vpop.permute.xlu0 %500
        %504 = vset.pattern.permute.xlu0 0
        %505 = vperm.xlu0 %504, %v330
        %v506 = vpop.permute.xlu0 %505
        %509 = vset.pattern.permute.xlu0 0
        %510 = vperm.xlu0 %509, %v331
        %v511 = vpop.permute.xlu0 %510
        %514 = vset.pattern.permute.xlu0 0
        %515 = vperm.xlu0 %514, %v332
        %v516 = vpop.permute.xlu0 %515
        %519 = vset.pattern.permute.xlu0 0
        %520 = vperm.xlu0 %519, %v333
        %v521 = vpop.permute.xlu0 %520
        %524 = vset.pattern.permute.xlu0 0
        %525 = vperm.xlu0 %524, %v334
        %v526 = vpop.permute.xlu0 %525
        %529 = vset.pattern.permute.xlu0 0
        %530 = vperm.xlu0 %529, %v335
        %v531 = vpop.permute.xlu0 %530
        %534 = vset.pattern.permute.xlu0 0
        %535 = vperm.xlu0 %534, %v336
        %v536 = vpop.permute.xlu0 %535
        %539 = vset.pattern.permute.xlu0 0
        %540 = vperm.xlu0 %539, %v337
        %v541 = vpop.permute.xlu0 %540
        %544 = vset.pattern.permute.xlu0 0
        %545 = vperm.xlu0 %544, %v338
        %v546 = vpop.permute.xlu0 %545
        %549 = vset.pattern.permute.xlu0 0
        %550 = vperm.xlu0 %549, %v339
        %v551 = vpop.permute.xlu0 %550
        %554 = vset.pattern.permute.xlu0 0
        %555 = vperm.xlu0 %554, %v340
        %v556 = vpop.permute.xlu0 %555
        %559 = vset.pattern.permute.xlu0 0
        %560 = vperm.xlu0 %559, %v341
        %v561 = vpop.permute.xlu0 %560
        %564 = vset.pattern.permute.xlu0 0
        %565 = vperm.xlu0 %564, %v342
        %v566 = vpop.permute.xlu0 %565
        %569 = vset.pattern.permute.xlu0 0
        %570 = vperm.xlu0 %569, %v343
        %v571 = vpop.permute.xlu0 %570
        %v574 = vlaneseq
        %v575 = vshrl.u32 %v574, 7
        %v576 = vsub.s32 0, %v575
        %v577 = vrot.slane %v344, %v576
        %v578 = vlaneseq
        %v579 = vshrl.u32 %v578, 7
        %v580 = vsub.s32 1, %v579
        %v581 = vrot.slane %v344, %v580
        %v584 = vmul.f32 %v416, %v577
        %v585 = vmul.f32 %v416, %v581
        %v586 = vmul.f32 %v421, %v577
        %v587 = vmul.f32 %v421, %v581
        %v588 = vmul.f32 %v426, %v577
        %v589 = vmul.f32 %v426, %v581
        %v590 = vmul.f32 %v431, %v577
        %v591 = vmul.f32 %v431, %v581
        %v592 = vmul.f32 %v436, %v577
        %v593 = vmul.f32 %v436, %v581
        %v594 = vmul.f32 %v441, %v577
        %v595 = vmul.f32 %v441, %v581
        %v596 = vmul.f32 %v446, %v577
        %v597 = vmul.f32 %v446, %v581
        %v598 = vmul.f32 %v451, %v577
        %v599 = vmul.f32 %v451, %v581
        %v600 = vmul.f32 %v456, %v577
        %v601 = vmul.f32 %v456, %v581
        %v602 = vmul.f32 %v461, %v577
        %v603 = vmul.f32 %v461, %v581
        %v604 = vmul.f32 %v466, %v577
        %v605 = vmul.f32 %v466, %v581
        %v606 = vmul.f32 %v471, %v577
        %v607 = vmul.f32 %v471, %v581
        %v608 = vmul.f32 %v476, %v577
        %v609 = vmul.f32 %v476, %v581
        %v610 = vmul.f32 %v481, %v577
        %v611 = vmul.f32 %v481, %v581
        %v612 = vmul.f32 %v486, %v577
        %v613 = vmul.f32 %v486, %v581
        %v614 = vmul.f32 %v491, %v577
        %v615 = vmul.f32 %v491, %v581
        %v616 = vmul.f32 %v496, %v577
        %v617 = vmul.f32 %v496, %v581
        %v618 = vmul.f32 %v501, %v577
        %v619 = vmul.f32 %v501, %v581
        %v620 = vmul.f32 %v506, %v577
        %v621 = vmul.f32 %v506, %v581
        %v622 = vmul.f32 %v511, %v577
        %v623 = vmul.f32 %v511, %v581
        %v624 = vmul.f32 %v516, %v577
        %v625 = vmul.f32 %v516, %v581
        %v626 = vmul.f32 %v521, %v577
        %v627 = vmul.f32 %v521, %v581
        %v628 = vmul.f32 %v526, %v577
        %v629 = vmul.f32 %v526, %v581
        %v630 = vmul.f32 %v531, %v577
        %v631 = vmul.f32 %v531, %v581
        %v632 = vmul.f32 %v536, %v577
        %v633 = vmul.f32 %v536, %v581
        %v634 = vmul.f32 %v541, %v577
        %v635 = vmul.f32 %v541, %v581
        %v636 = vmul.f32 %v546, %v577
        %v637 = vmul.f32 %v546, %v581
        %v638 = vmul.f32 %v551, %v577
        %v639 = vmul.f32 %v551, %v581
        %v640 = vmul.f32 %v556, %v577
        %v641 = vmul.f32 %v556, %v581
        %v642 = vmul.f32 %v561, %v577
        %v643 = vmul.f32 %v561, %v581
        %v644 = vmul.f32 %v566, %v577
        %v645 = vmul.f32 %v566, %v581
        %v646 = vmul.f32 %v571, %v577
        %v647 = vmul.f32 %v571, %v581
        %v680 = vunpack.c.l.b16 %v381
        %v681 = vunpack.c.h.b16 %v381
        %v682 = vunpack.c.l.b16 %v382
        %v683 = vunpack.c.h.b16 %v382
        %v684 = vunpack.c.l.b16 %v383
        %v685 = vunpack.c.h.b16 %v383
        %v686 = vunpack.c.l.b16 %v384
        %v687 = vunpack.c.h.b16 %v384
        %v688 = vunpack.c.l.b16 %v385
        %v689 = vunpack.c.h.b16 %v385
        %v690 = vunpack.c.l.b16 %v386
        %v691 = vunpack.c.h.b16 %v386
        %v692 = vunpack.c.l.b16 %v387
        %v693 = vunpack.c.h.b16 %v387
        %v694 = vunpack.c.l.b16 %v388
        %v695 = vunpack.c.h.b16 %v388
        %v696 = vunpack.c.l.b16 %v389
        %v697 = vunpack.c.h.b16 %v389
        %v698 = vunpack.c.l.b16 %v390
        %v699 = vunpack.c.h.b16 %v390
        %v700 = vunpack.c.l.b16 %v391
        %v701 = vunpack.c.h.b16 %v391
        %v702 = vunpack.c.l.b16 %v392
        %v703 = vunpack.c.h.b16 %v392
        %v704 = vunpack.c.l.b16 %v393
        %v705 = vunpack.c.h.b16 %v393
        %v706 = vunpack.c.l.b16 %v394
        %v707 = vunpack.c.h.b16 %v394
        %v708 = vunpack.c.l.b16 %v395
        %v709 = vunpack.c.h.b16 %v395
        %v710 = vunpack.c.l.b16 %v396
        %v711 = vunpack.c.h.b16 %v396
        %v712 = vunpack.c.l.b16 %v397
        %v713 = vunpack.c.h.b16 %v397
        %v714 = vunpack.c.l.b16 %v398
        %v715 = vunpack.c.h.b16 %v398
        %v716 = vunpack.c.l.b16 %v399
        %v717 = vunpack.c.h.b16 %v399
        %v718 = vunpack.c.l.b16 %v400
        %v719 = vunpack.c.h.b16 %v400
        %v720 = vunpack.c.l.b16 %v401
        %v721 = vunpack.c.h.b16 %v401
        %v722 = vunpack.c.l.b16 %v402
        %v723 = vunpack.c.h.b16 %v402
        %v724 = vunpack.c.l.b16 %v403
        %v725 = vunpack.c.h.b16 %v403
        %v726 = vunpack.c.l.b16 %v404
        %v727 = vunpack.c.h.b16 %v404
        %v728 = vunpack.c.l.b16 %v405
        %v729 = vunpack.c.h.b16 %v405
        %v730 = vunpack.c.l.b16 %v406
        %v731 = vunpack.c.h.b16 %v406
        %v732 = vunpack.c.l.b16 %v407
        %v733 = vunpack.c.h.b16 %v407
        %v734 = vunpack.c.l.b16 %v408
        %v735 = vunpack.c.h.b16 %v408
        %v736 = vunpack.c.l.b16 %v409
        %v737 = vunpack.c.h.b16 %v409
        %v738 = vunpack.c.l.b16 %v410
        %v739 = vunpack.c.h.b16 %v410
        %v740 = vunpack.c.l.b16 %v411
        %v741 = vunpack.c.h.b16 %v411
        %v742 = vunpack.c.l.b16 %v412
        %v743 = vunpack.c.h.b16 %v412
        %v744 = vpack.c.b16 %v682, %v680
        %v745 = vpack.c.b16 %v683, %v681
        %v746 = vpack.c.b16 %v686, %v684
        %v747 = vpack.c.b16 %v687, %v685
        %v748 = vpack.c.b16 %v690, %v688
        %v749 = vpack.c.b16 %v691, %v689
        %v750 = vpack.c.b16 %v694, %v692
        %v751 = vpack.c.b16 %v695, %v693
        %v752 = vpack.c.b16 %v698, %v696
        %v753 = vpack.c.b16 %v699, %v697
        %v754 = vpack.c.b16 %v702, %v700
        %v755 = vpack.c.b16 %v703, %v701
        %v756 = vpack.c.b16 %v706, %v704
        %v757 = vpack.c.b16 %v707, %v705
        %v758 = vpack.c.b16 %v710, %v708
        %v759 = vpack.c.b16 %v711, %v709
        %v760 = vpack.c.b16 %v714, %v712
        %v761 = vpack.c.b16 %v715, %v713
        %v762 = vpack.c.b16 %v718, %v716
        %v763 = vpack.c.b16 %v719, %v717
        %v764 = vpack.c.b16 %v722, %v720
        %v765 = vpack.c.b16 %v723, %v721
        %v766 = vpack.c.b16 %v726, %v724
        %v767 = vpack.c.b16 %v727, %v725
        %v768 = vpack.c.b16 %v730, %v728
        %v769 = vpack.c.b16 %v731, %v729
        %v770 = vpack.c.b16 %v734, %v732
        %v771 = vpack.c.b16 %v735, %v733
        %v772 = vpack.c.b16 %v738, %v736
        %v773 = vpack.c.b16 %v739, %v737
        %v774 = vpack.c.b16 %v742, %v740
        %v775 = vpack.c.b16 %v743, %v741
        %808 = vmatprep.subr.bf16.mxu0 %v745
        %809 = vmatpush1.bf16.msra.mxu0 %v744
        %810 = vmatprep.subr.bf16.mxu0 %v747
        %811 = vmatpush1.bf16.msra.mxu0 %v746
        %812 = vmatprep.subr.bf16.mxu0 %v749
        %813 = vmatpush1.bf16.msra.mxu0 %v748
        %814 = vmatprep.subr.bf16.mxu0 %v751
        %815 = vmatpush1.bf16.msra.mxu0 %v750
        %816 = vmatprep.subr.bf16.mxu0 %v753
        %817 = vmatpush1.bf16.msra.mxu0 %v752
        %818 = vmatprep.subr.bf16.mxu0 %v755
        %819 = vmatpush1.bf16.msra.mxu0 %v754
        %820 = vmatprep.subr.bf16.mxu0 %v757
        %821 = vmatpush1.bf16.msra.mxu0 %v756
        %822 = vmatprep.subr.bf16.mxu0 %v759
        %823 = vmatpush1.bf16.msra.mxu0 %v758
        %824 = vmatprep.subr.bf16.mxu0 %v761
        %825 = vmatpush1.bf16.msra.mxu0 %v760
        %826 = vmatprep.subr.bf16.mxu0 %v763
        %827 = vmatpush1.bf16.msra.mxu0 %v762
        %828 = vmatprep.subr.bf16.mxu0 %v765
        %829 = vmatpush1.bf16.msra.mxu0 %v764
        %830 = vmatprep.subr.bf16.mxu0 %v767
        %831 = vmatpush1.bf16.msra.mxu0 %v766
        %832 = vmatprep.subr.bf16.mxu0 %v769
        %833 = vmatpush1.bf16.msra.mxu0 %v768
        %834 = vmatprep.subr.bf16.mxu0 %v771
        %835 = vmatpush1.bf16.msra.mxu0 %v770
        %836 = vmatprep.subr.bf16.mxu0 %v773
        %837 = vmatpush1.bf16.msra.mxu0 %v772
        %838 = vmatprep.subr.bf16.mxu0 %v775
        %839 = vmatpush1.bf16.msra.mxu0 %v774
        %840 = vmatprep.mubr.bf16.mxu0 %v350
        %841 = vmatmul.mubr.bf16.gmra.mrb[0].mxu0 %v349
        %v842 = vpop.f32.mrb[0].mxu0
        %v843 = vadd.f32 %v584, %v842
        %v844 = vpop.f32.mrb[0].mxu0
        %v845 = vadd.f32 %v585, %v844
        %v846 = vpop.f32.mrb[0].mxu0
        %v847 = vadd.f32 %v586, %v846
        %v848 = vpop.f32.mrb[0].mxu0
        %v849 = vadd.f32 %v587, %v848
        %850 = vmatprep.mubr.bf16.mxu0 %v352
        %851 = vmatmul.mubr.bf16.gmra.mrb[0].mxu0 %v351
        %v852 = vpop.f32.mrb[0].mxu0
        %v853 = vadd.f32 %v588, %v852
        %v854 = vpop.f32.mrb[0].mxu0
        %v855 = vadd.f32 %v589, %v854
        %v856 = vpop.f32.mrb[0].mxu0
        %v857 = vadd.f32 %v590, %v856
        %v858 = vpop.f32.mrb[0].mxu0
        %v859 = vadd.f32 %v591, %v858
        %860 = vmatprep.mubr.bf16.mxu0 %v354
        %861 = vmatmul.mubr.bf16.gmra.mrb[0].mxu0 %v353
        %v862 = vpop.f32.mrb[0].mxu0
        %v863 = vadd.f32 %v592, %v862
        %v864 = vpop.f32.mrb[0].mxu0
        %v865 = vadd.f32 %v593, %v864
        %v866 = vpop.f32.mrb[0].mxu0
        %v867 = vadd.f32 %v594, %v866
        %v868 = vpop.f32.mrb[0].mxu0
        %v869 = vadd.f32 %v595, %v868
        %870 = vmatprep.mubr.bf16.mxu0 %v356
        %871 = vmatmul.mubr.bf16.gmra.mrb[0].mxu0 %v355
        %v872 = vpop.f32.mrb[0].mxu0
        %v873 = vadd.f32 %v596, %v872
        %v874 = vpop.f32.mrb[0].mxu0
        %v875 = vadd.f32 %v597, %v874
        %v876 = vpop.f32.mrb[0].mxu0
        %v877 = vadd.f32 %v598, %v876
        %v878 = vpop.f32.mrb[0].mxu0
        %v879 = vadd.f32 %v599, %v878
        %880 = vmatprep.mubr.bf16.mxu0 %v358
        %881 = vmatmul.mubr.bf16.gmra.mrb[0].mxu0 %v357
        %v882 = vpop.f32.mrb[0].mxu0
        %v883 = vadd.f32 %v600, %v882
        %v884 = vpop.f32.mrb[0].mxu0
        %v885 = vadd.f32 %v601, %v884
        %v886 = vpop.f32.mrb[0].mxu0
        %v887 = vadd.f32 %v602, %v886
        %v888 = vpop.f32.mrb[0].mxu0
        %v889 = vadd.f32 %v603, %v888
        %890 = vmatprep.mubr.bf16.mxu0 %v360
        %891 = vmatmul.mubr.bf16.gmra.mrb[0].mxu0 %v359
        %v892 = vpop.f32.mrb[0].mxu0
        %v893 = vadd.f32 %v604, %v892
        %v894 = vpop.f32.mrb[0].mxu0
        %v895 = vadd.f32 %v605, %v894
        %v896 = vpop.f32.mrb[0].mxu0
        %v897 = vadd.f32 %v606, %v896
        %v898 = vpop.f32.mrb[0].mxu0
        %v899 = vadd.f32 %v607, %v898
        %900 = vmatprep.mubr.bf16.mxu0 %v362
        %901 = vmatmul.mubr.bf16.gmra.mrb[0].mxu0 %v361
        %v902 = vpop.f32.mrb[0].mxu0
        %v903 = vadd.f32 %v608, %v902
        %v904 = vpop.f32.mrb[0].mxu0
        %v905 = vadd.f32 %v609, %v904
        %v906 = vpop.f32.mrb[0].mxu0
        %v907 = vadd.f32 %v610, %v906
        %v908 = vpop.f32.mrb[0].mxu0
        %v909 = vadd.f32 %v611, %v908
        %910 = vmatprep.mubr.bf16.mxu0 %v364
        %911 = vmatmul.mubr.bf16.gmra.mrb[0].mxu0 %v363
        %v912 = vpop.f32.mrb[0].mxu0
        %v913 = vadd.f32 %v612, %v912
        %v914 = vpop.f32.mrb[0].mxu0
        %v915 = vadd.f32 %v613, %v914
        %v916 = vpop.f32.mrb[0].mxu0
        %v917 = vadd.f32 %v614, %v916
        %v918 = vpop.f32.mrb[0].mxu0
        %v919 = vadd.f32 %v615, %v918
        %920 = vmatprep.mubr.bf16.mxu0 %v366
        %921 = vmatmul.mubr.bf16.gmra.mrb[0].mxu0 %v365
        %v922 = vpop.f32.mrb[0].mxu0
        %v923 = vadd.f32 %v616, %v922
        %v924 = vpop.f32.mrb[0].mxu0
        %v925 = vadd.f32 %v617, %v924
        %v926 = vpop.f32.mrb[0].mxu0
        %v927 = vadd.f32 %v618, %v926
        %v928 = vpop.f32.mrb[0].mxu0
        %v929 = vadd.f32 %v619, %v928
        %930 = vmatprep.mubr.bf16.mxu0 %v368
        %931 = vmatmul.mubr.bf16.gmra.mrb[0].mxu0 %v367
        %v932 = vpop.f32.mrb[0].mxu0
        %v933 = vadd.f32 %v620, %v932
        %v934 = vpop.f32.mrb[0].mxu0
        %v935 = vadd.f32 %v621, %v934
        %v936 = vpop.f32.mrb[0].mxu0
        %v937 = vadd.f32 %v622, %v936
        %v938 = vpop.f32.mrb[0].mxu0
        %v939 = vadd.f32 %v623, %v938
        %940 = vmatprep.mubr.bf16.mxu0 %v370
        %941 = vmatmul.mubr.bf16.gmra.mrb[0].mxu0 %v369
        %v942 = vpop.f32.mrb[0].mxu0
        %v943 = vadd.f32 %v624, %v942
        %v944 = vpop.f32.mrb[0].mxu0
        %v945 = vadd.f32 %v625, %v944
        %v946 = vpop.f32.mrb[0].mxu0
        %v947 = vadd.f32 %v626, %v946
        %v948 = vpop.f32.mrb[0].mxu0
        %v949 = vadd.f32 %v627, %v948
        %950 = vmatprep.mubr.bf16.mxu0 %v372
        %951 = vmatmul.mubr.bf16.gmra.mrb[0].mxu0 %v371
        %v952 = vpop.f32.mrb[0].mxu0
        %v953 = vadd.f32 %v628, %v952
        %v954 = vpop.f32.mrb[0].mxu0
        %v955 = vadd.f32 %v629, %v954
        %v956 = vpop.f32.mrb[0].mxu0
        %v957 = vadd.f32 %v630, %v956
        %v958 = vpop.f32.mrb[0].mxu0
        %v959 = vadd.f32 %v631, %v958
        %960 = vmatprep.mubr.bf16.mxu0 %v374
        %961 = vmatmul.mubr.bf16.gmra.mrb[0].mxu0 %v373
        %v962 = vpop.f32.mrb[0].mxu0
        %v963 = vadd.f32 %v632, %v962
        %v964 = vpop.f32.mrb[0].mxu0
        %v965 = vadd.f32 %v633, %v964
        %v966 = vpop.f32.mrb[0].mxu0
        %v967 = vadd.f32 %v634, %v966
        %v968 = vpop.f32.mrb[0].mxu0
        %v969 = vadd.f32 %v635, %v968
        %970 = vmatprep.mubr.bf16.mxu0 %v376
        %971 = vmatmul.mubr.bf16.gmra.mrb[0].mxu0 %v375
        %v972 = vpop.f32.mrb[0].mxu0
        %v973 = vadd.f32 %v636, %v972
        %v974 = vpop.f32.mrb[0].mxu0
        %v975 = vadd.f32 %v637, %v974
        %v976 = vpop.f32.mrb[0].mxu0
        %v977 = vadd.f32 %v638, %v976
        %v978 = vpop.f32.mrb[0].mxu0
        %v979 = vadd.f32 %v639, %v978
        %980 = vmatprep.mubr.bf16.mxu0 %v378
        %981 = vmatmul.mubr.bf16.gmra.mrb[0].mxu0 %v377
        %v982 = vpop.f32.mrb[0].mxu0
        %v983 = vadd.f32 %v640, %v982
        %v984 = vpop.f32.mrb[0].mxu0
        %v985 = vadd.f32 %v641, %v984
        %v986 = vpop.f32.mrb[0].mxu0
        %v987 = vadd.f32 %v642, %v986
        %v988 = vpop.f32.mrb[0].mxu0
        %v989 = vadd.f32 %v643, %v988
        %990 = vmatprep.mubr.bf16.mxu0 %v380
        %991 = vmatmul.mubr.bf16.gmra.mrb[0].mxu0 %v379
        %v992 = vpop.f32.mrb[0].mxu0
        %v993 = vadd.f32 %v644, %v992
        %v994 = vpop.f32.mrb[0].mxu0
        %v995 = vadd.f32 %v645, %v994
        %v996 = vpop.f32.mrb[0].mxu0
        %v997 = vadd.f32 %v646, %v996
        %v998 = vpop.f32.mrb[0].mxu0
        %v999 = vadd.f32 %v647, %v998
        %1000 = vdwg.mxu0
        %v1002 = vlaneseq
        %v1003 = vshrl.u32 %v1002, 7
        %v1004 = vsub.s32 0, %v1003
        %v1005 = vrot.slane %v346, %v1004
        %v1006 = vlaneseq
        %v1007 = vshrl.u32 %v1006, 7
        %v1008 = vsub.s32 1, %v1007
        %v1009 = vrot.slane %v346, %v1008
        %v1012 = vadd.f32 %v843, %v1005
        %v1013 = vadd.f32 %v845, %v1009
        %v1014 = vadd.f32 %v847, %v1005
        %v1015 = vadd.f32 %v849, %v1009
        %v1016 = vadd.f32 %v853, %v1005
        %v1017 = vadd.f32 %v855, %v1009
        %v1018 = vadd.f32 %v857, %v1005
        %v1019 = vadd.f32 %v859, %v1009
        %v1020 = vadd.f32 %v863, %v1005
        %v1021 = vadd.f32 %v865, %v1009
        %v1022 = vadd.f32 %v867, %v1005
        %v1023 = vadd.f32 %v869, %v1009
        %v1024 = vadd.f32 %v873, %v1005
        %v1025 = vadd.f32 %v875, %v1009
        %v1026 = vadd.f32 %v877, %v1005
        %v1027 = vadd.f32 %v879, %v1009
        %v1028 = vadd.f32 %v883, %v1005
        %v1029 = vadd.f32 %v885, %v1009
        %v1030 = vadd.f32 %v887, %v1005
        %v1031 = vadd.f32 %v889, %v1009
        %v1032 = vadd.f32 %v893, %v1005
        %v1033 = vadd.f32 %v895, %v1009
        %v1034 = vadd.f32 %v897, %v1005
        %v1035 = vadd.f32 %v899, %v1009
        %v1036 = vadd.f32 %v903, %v1005
        %v1037 = vadd.f32 %v905, %v1009
        %v1038 = vadd.f32 %v907, %v1005
        %v1039 = vadd.f32 %v909, %v1009
        %v1040 = vadd.f32 %v913, %v1005
        %v1041 = vadd.f32 %v915, %v1009
        %v1042 = vadd.f32 %v917, %v1005
        %v1043 = vadd.f32 %v919, %v1009
        %v1044 = vadd.f32 %v923, %v1005
        %v1045 = vadd.f32 %v925, %v1009
        %v1046 = vadd.f32 %v927, %v1005
        %v1047 = vadd.f32 %v929, %v1009
        %v1048 = vadd.f32 %v933, %v1005
        %v1049 = vadd.f32 %v935, %v1009
        %v1050 = vadd.f32 %v937, %v1005
        %v1051 = vadd.f32 %v939, %v1009
        %v1052 = vadd.f32 %v943, %v1005
        %v1053 = vadd.f32 %v945, %v1009
        %v1054 = vadd.f32 %v947, %v1005
        %v1055 = vadd.f32 %v949, %v1009
        %v1056 = vadd.f32 %v953, %v1005
        %v1057 = vadd.f32 %v955, %v1009
        %v1058 = vadd.f32 %v957, %v1005
        %v1059 = vadd.f32 %v959, %v1009
        %v1060 = vadd.f32 %v963, %v1005
        %v1061 = vadd.f32 %v965, %v1009
        %v1062 = vadd.f32 %v967, %v1005
        %v1063 = vadd.f32 %v969, %v1009
        %v1064 = vadd.f32 %v973, %v1005
        %v1065 = vadd.f32 %v975, %v1009
        %v1066 = vadd.f32 %v977, %v1005
        %v1067 = vadd.f32 %v979, %v1009
        %v1068 = vadd.f32 %v983, %v1005
        %v1069 = vadd.f32 %v985, %v1009
        %v1070 = vadd.f32 %v987, %v1005
        %v1071 = vadd.f32 %v989, %v1009
        %v1072 = vadd.f32 %v993, %v1005
        %v1073 = vadd.f32 %v995, %v1009
        %v1074 = vadd.f32 %v997, %v1005
        %v1075 = vadd.f32 %v999, %v1009
        %vm1076 = vcmp.gt.f32.partialorder %v1012, 0.0
        %vm1077 = vcmp.gt.f32.partialorder %v1013, 0.0
        %vm1078 = vcmp.gt.f32.partialorder %v1014, 0.0
        %vm1079 = vcmp.gt.f32.partialorder %v1015, 0.0
        %vm1080 = vcmp.gt.f32.partialorder %v1016, 0.0
        %vm1081 = vcmp.gt.f32.partialorder %v1017, 0.0
        %vm1082 = vcmp.gt.f32.partialorder %v1018, 0.0
        %vm1083 = vcmp.gt.f32.partialorder %v1019, 0.0
        %vm1084 = vcmp.gt.f32.partialorder %v1020, 0.0
        %vm1085 = vcmp.gt.f32.partialorder %v1021, 0.0
        %vm1086 = vcmp.gt.f32.partialorder %v1022, 0.0
        %vm1087 = vcmp.gt.f32.partialorder %v1023, 0.0
        %vm1088 = vcmp.gt.f32.partialorder %v1024, 0.0
        %vm1089 = vcmp.gt.f32.partialorder %v1025, 0.0
        %vm1090 = vcmp.gt.f32.partialorder %v1026, 0.0
        %vm1091 = vcmp.gt.f32.partialorder %v1027, 0.0
        %vm1092 = vcmp.gt.f32.partialorder %v1028, 0.0
        %vm1093 = vcmp.gt.f32.partialorder %v1029, 0.0
        %vm1094 = vcmp.gt.f32.partialorder %v1030, 0.0
        %vm1095 = vcmp.gt.f32.partialorder %v1031, 0.0
        %vm1096 = vcmp.gt.f32.partialorder %v1032, 0.0
        %vm1097 = vcmp.gt.f32.partialorder %v1033, 0.0
        %vm1098 = vcmp.gt.f32.partialorder %v1034, 0.0
        %vm1099 = vcmp.gt.f32.partialorder %v1035, 0.0
        %vm1100 = vcmp.gt.f32.partialorder %v1036, 0.0
        %vm1101 = vcmp.gt.f32.partialorder %v1037, 0.0
        %vm1102 = vcmp.gt.f32.partialorder %v1038, 0.0
        %vm1103 = vcmp.gt.f32.partialorder %v1039, 0.0
        %vm1104 = vcmp.gt.f32.partialorder %v1040, 0.0
        %vm1105 = vcmp.gt.f32.partialorder %v1041, 0.0
        %vm1106 = vcmp.gt.f32.partialorder %v1042, 0.0
        %vm1107 = vcmp.gt.f32.partialorder %v1043, 0.0
        %vm1108 = vcmp.gt.f32.partialorder %v1044, 0.0
        %vm1109 = vcmp.gt.f32.partialorder %v1045, 0.0
        %vm1110 = vcmp.gt.f32.partialorder %v1046, 0.0
        %vm1111 = vcmp.gt.f32.partialorder %v1047, 0.0
        %vm1112 = vcmp.gt.f32.partialorder %v1048, 0.0
        %vm1113 = vcmp.gt.f32.partialorder %v1049, 0.0
        %vm1114 = vcmp.gt.f32.partialorder %v1050, 0.0
        %vm1115 = vcmp.gt.f32.partialorder %v1051, 0.0
        %vm1116 = vcmp.gt.f32.partialorder %v1052, 0.0
        %vm1117 = vcmp.gt.f32.partialorder %v1053, 0.0
        %vm1118 = vcmp.gt.f32.partialorder %v1054, 0.0
        %vm1119 = vcmp.gt.f32.partialorder %v1055, 0.0
        %vm1120 = vcmp.gt.f32.partialorder %v1056, 0.0
        %vm1121 = vcmp.gt.f32.partialorder %v1057, 0.0
        %vm1122 = vcmp.gt.f32.partialorder %v1058, 0.0
        %vm1123 = vcmp.gt.f32.partialorder %v1059, 0.0
        %vm1124 = vcmp.gt.f32.partialorder %v1060, 0.0
        %vm1125 = vcmp.gt.f32.partialorder %v1061, 0.0
        %vm1126 = vcmp.gt.f32.partialorder %v1062, 0.0
        %vm1127 = vcmp.gt.f32.partialorder %v1063, 0.0
        %vm1128 = vcmp.gt.f32.partialorder %v1064, 0.0
        %vm1129 = vcmp.gt.f32.partialorder %v1065, 0.0
        %vm1130 = vcmp.gt.f32.partialorder %v1066, 0.0
        %vm1131 = vcmp.gt.f32.partialorder %v1067, 0.0
        %vm1132 = vcmp.gt.f32.partialorder %v1068, 0.0
        %vm1133 = vcmp.gt.f32.partialorder %v1069, 0.0
        %vm1134 = vcmp.gt.f32.partialorder %v1070, 0.0
        %vm1135 = vcmp.gt.f32.partialorder %v1071, 0.0
        %vm1136 = vcmp.gt.f32.partialorder %v1072, 0.0
        %vm1137 = vcmp.gt.f32.partialorder %v1073, 0.0
        %vm1138 = vcmp.gt.f32.partialorder %v1074, 0.0
        %vm1139 = vcmp.gt.f32.partialorder %v1075, 0.0
        %v1140 = vmul.f32 %v1012, 1.442695
        %v1141 = vpow.pop %v1140
        %v1142 = vmul.f32 %v1013, 1.442695
        %v1143 = vpow.pop %v1142
        %v1144 = vmul.f32 %v1014, 1.442695
        %v1145 = vpow.pop %v1144
        %v1146 = vmul.f32 %v1015, 1.442695
        %v1147 = vpow.pop %v1146
        %v1148 = vmul.f32 %v1016, 1.442695
        %v1149 = vpow.pop %v1148
        %v1150 = vmul.f32 %v1017, 1.442695
        %v1151 = vpow.pop %v1150
        %v1152 = vmul.f32 %v1018, 1.442695
        %v1153 = vpow.pop %v1152
        %v1154 = vmul.f32 %v1019, 1.442695
        %v1155 = vpow.pop %v1154
        %v1156 = vmul.f32 %v1020, 1.442695
        %v1157 = vpow.pop %v1156
        %v1158 = vmul.f32 %v1021, 1.442695
        %v1159 = vpow.pop %v1158
        %v1160 = vmul.f32 %v1022, 1.442695
        %v1161 = vpow.pop %v1160
        %v1162 = vmul.f32 %v1023, 1.442695
        %v1163 = vpow.pop %v1162
        %v1164 = vmul.f32 %v1024, 1.442695
        %v1165 = vpow.pop %v1164
        %v1166 = vmul.f32 %v1025, 1.442695
        %v1167 = vpow.pop %v1166
        %v1168 = vmul.f32 %v1026, 1.442695
        %v1169 = vpow.pop %v1168
        %v1170 = vmul.f32 %v1027, 1.442695
        %v1171 = vpow.pop %v1170
        %v1172 = vmul.f32 %v1028, 1.442695
        %v1173 = vpow.pop %v1172
        %v1174 = vmul.f32 %v1029, 1.442695
        %v1175 = vpow.pop %v1174
        %v1176 = vmul.f32 %v1030, 1.442695
        %v1177 = vpow.pop %v1176
        %v1178 = vmul.f32 %v1031, 1.442695
        %v1179 = vpow.pop %v1178
        %v1180 = vmul.f32 %v1032, 1.442695
        %v1181 = vpow.pop %v1180
        %v1182 = vmul.f32 %v1033, 1.442695
        %v1183 = vpow.pop %v1182
        %v1184 = vmul.f32 %v1034, 1.442695
        %v1185 = vpow.pop %v1184
        %v1186 = vmul.f32 %v1035, 1.442695
        %v1187 = vpow.pop %v1186
        %v1188 = vmul.f32 %v1036, 1.442695
        %v1189 = vpow.pop %v1188
        %v1190 = vmul.f32 %v1037, 1.442695
        %v1191 = vpow.pop %v1190
        %v1192 = vmul.f32 %v1038, 1.442695
        %v1193 = vpow.pop %v1192
        %v1194 = vmul.f32 %v1039, 1.442695
        %v1195 = vpow.pop %v1194
        %v1196 = vmul.f32 %v1040, 1.442695
        %v1197 = vpow.pop %v1196
        %v1198 = vmul.f32 %v1041, 1.442695
        %v1199 = vpow.pop %v1198
        %v1200 = vmul.f32 %v1042, 1.442695
        %v1201 = vpow.pop %v1200
        %v1202 = vmul.f32 %v1043, 1.442695
        %v1203 = vpow.pop %v1202
        %v1204 = vmul.f32 %v1044, 1.442695
        %v1205 = vpow.pop %v1204
        %v1206 = vmul.f32 %v1045, 1.442695
        %v1207 = vpow.pop %v1206
        %v1208 = vmul.f32 %v1046, 1.442695
        %v1209 = vpow.pop %v1208
        %v1210 = vmul.f32 %v1047, 1.442695
        %v1211 = vpow.pop %v1210
        %v1212 = vmul.f32 %v1048, 1.442695
        %v1213 = vpow.pop %v1212
        %v1214 = vmul.f32 %v1049, 1.442695
        %v1215 = vpow.pop %v1214
        %v1216 = vmul.f32 %v1050, 1.442695
        %v1217 = vpow.pop %v1216
        %v1218 = vmul.f32 %v1051, 1.442695
        %v1219 = vpow.pop %v1218
        %v1220 = vmul.f32 %v1052, 1.442695
        %v1221 = vpow.pop %v1220
        %v1222 = vmul.f32 %v1053, 1.442695
        %v1223 = vpow.pop %v1222
        %v1224 = vmul.f32 %v1054, 1.442695
        %v1225 = vpow.pop %v1224
        %v1226 = vmul.f32 %v1055, 1.442695
        %v1227 = vpow.pop %v1226
        %v1228 = vmul.f32 %v1056, 1.442695
        %v1229 = vpow.pop %v1228
        %v1230 = vmul.f32 %v1057, 1.442695
        %v1231 = vpow.pop %v1230
        %v1232 = vmul.f32 %v1058, 1.442695
        %v1233 = vpow.pop %v1232
        %v1234 = vmul.f32 %v1059, 1.442695
        %v1235 = vpow.pop %v1234
        %v1236 = vmul.f32 %v1060, 1.442695
        %v1237 = vpow.pop %v1236
        %v1238 = vmul.f32 %v1061, 1.442695
        %v1239 = vpow.pop %v1238
        %v1240 = vmul.f32 %v1062, 1.442695
        %v1241 = vpow.pop %v1240
        %v1242 = vmul.f32 %v1063, 1.442695
        %v1243 = vpow.pop %v1242
        %v1244 = vmul.f32 %v1064, 1.442695
        %v1245 = vpow.pop %v1244
        %v1246 = vmul.f32 %v1065, 1.442695
        %v1247 = vpow.pop %v1246
        %v1248 = vmul.f32 %v1066, 1.442695
        %v1249 = vpow.pop %v1248
        %v1250 = vmul.f32 %v1067, 1.442695
        %v1251 = vpow.pop %v1250
        %v1252 = vmul.f32 %v1068, 1.442695
        %v1253 = vpow.pop %v1252
        %v1254 = vmul.f32 %v1069, 1.442695
        %v1255 = vpow.pop %v1254
        %v1256 = vmul.f32 %v1070, 1.442695
        %v1257 = vpow.pop %v1256
        %v1258 = vmul.f32 %v1071, 1.442695
        %v1259 = vpow.pop %v1258
        %v1260 = vmul.f32 %v1072, 1.442695
        %v1261 = vpow.pop %v1260
        %v1262 = vmul.f32 %v1073, 1.442695
        %v1263 = vpow.pop %v1262
        %v1264 = vmul.f32 %v1074, 1.442695
        %v1265 = vpow.pop %v1264
        %v1266 = vmul.f32 %v1075, 1.442695
        %v1267 = vpow.pop %v1266
        %v1268 = vsub.f32 %v1141, 1.0
        %v1269 = vsub.f32 %v1143, 1.0
        %v1270 = vsub.f32 %v1145, 1.0
        %v1271 = vsub.f32 %v1147, 1.0
        %v1272 = vsub.f32 %v1149, 1.0
        %v1273 = vsub.f32 %v1151, 1.0
        %v1274 = vsub.f32 %v1153, 1.0
        %v1275 = vsub.f32 %v1155, 1.0
        %v1276 = vsub.f32 %v1157, 1.0
        %v1277 = vsub.f32 %v1159, 1.0
        %v1278 = vsub.f32 %v1161, 1.0
        %v1279 = vsub.f32 %v1163, 1.0
        %v1280 = vsub.f32 %v1165, 1.0
        %v1281 = vsub.f32 %v1167, 1.0
        %v1282 = vsub.f32 %v1169, 1.0
        %v1283 = vsub.f32 %v1171, 1.0
        %v1284 = vsub.f32 %v1173, 1.0
        %v1285 = vsub.f32 %v1175, 1.0
        %v1286 = vsub.f32 %v1177, 1.0
        %v1287 = vsub.f32 %v1179, 1.0
        %v1288 = vsub.f32 %v1181, 1.0
        %v1289 = vsub.f32 %v1183, 1.0
        %v1290 = vsub.f32 %v1185, 1.0
        %v1291 = vsub.f32 %v1187, 1.0
        %v1292 = vsub.f32 %v1189, 1.0
        %v1293 = vsub.f32 %v1191, 1.0
        %v1294 = vsub.f32 %v1193, 1.0
        %v1295 = vsub.f32 %v1195, 1.0
        %v1296 = vsub.f32 %v1197, 1.0
        %v1297 = vsub.f32 %v1199, 1.0
        %v1298 = vsub.f32 %v1201, 1.0
        %v1299 = vsub.f32 %v1203, 1.0
        %v1300 = vsub.f32 %v1205, 1.0
        %v1301 = vsub.f32 %v1207, 1.0
        %v1302 = vsub.f32 %v1209, 1.0
        %v1303 = vsub.f32 %v1211, 1.0
        %v1304 = vsub.f32 %v1213, 1.0
        %v1305 = vsub.f32 %v1215, 1.0
        %v1306 = vsub.f32 %v1217, 1.0
        %v1307 = vsub.f32 %v1219, 1.0
        %v1308 = vsub.f32 %v1221, 1.0
        %v1309 = vsub.f32 %v1223, 1.0
        %v1310 = vsub.f32 %v1225, 1.0
        %v1311 = vsub.f32 %v1227, 1.0
        %v1312 = vsub.f32 %v1229, 1.0
        %v1313 = vsub.f32 %v1231, 1.0
        %v1314 = vsub.f32 %v1233, 1.0
        %v1315 = vsub.f32 %v1235, 1.0
        %v1316 = vsub.f32 %v1237, 1.0
        %v1317 = vsub.f32 %v1239, 1.0
        %v1318 = vsub.f32 %v1241, 1.0
        %v1319 = vsub.f32 %v1243, 1.0
        %v1320 = vsub.f32 %v1245, 1.0
        %v1321 = vsub.f32 %v1247, 1.0
        %v1322 = vsub.f32 %v1249, 1.0
        %v1323 = vsub.f32 %v1251, 1.0
        %v1324 = vsub.f32 %v1253, 1.0
        %v1325 = vsub.f32 %v1255, 1.0
        %v1326 = vsub.f32 %v1257, 1.0
        %v1327 = vsub.f32 %v1259, 1.0
        %v1328 = vsub.f32 %v1261, 1.0
        %v1329 = vsub.f32 %v1263, 1.0
        %v1330 = vsub.f32 %v1265, 1.0
        %v1331 = vsub.f32 %v1267, 1.0
        %v1332 = vsel %vm1076, %v1012, %v1268
        %v1333 = vsel %vm1077, %v1013, %v1269
        %v1334 = vsel %vm1078, %v1014, %v1270
        %v1335 = vsel %vm1079, %v1015, %v1271
        %v1336 = vsel %vm1080, %v1016, %v1272
        %v1337 = vsel %vm1081, %v1017, %v1273
        %v1338 = vsel %vm1082, %v1018, %v1274
        %v1339 = vsel %vm1083, %v1019, %v1275
        %v1340 = vsel %vm1084, %v1020, %v1276
        %v1341 = vsel %vm1085, %v1021, %v1277
        %v1342 = vsel %vm1086, %v1022, %v1278
        %v1343 = vsel %vm1087, %v1023, %v1279
        %v1344 = vsel %vm1088, %v1024, %v1280
        %v1345 = vsel %vm1089, %v1025, %v1281
        %v1346 = vsel %vm1090, %v1026, %v1282
        %v1347 = vsel %vm1091, %v1027, %v1283
        %v1348 = vsel %vm1092, %v1028, %v1284
        %v1349 = vsel %vm1093, %v1029, %v1285
        %v1350 = vsel %vm1094, %v1030, %v1286
        %v1351 = vsel %vm1095, %v1031, %v1287
        %v1352 = vsel %vm1096, %v1032, %v1288
        %v1353 = vsel %vm1097, %v1033, %v1289
        %v1354 = vsel %vm1098, %v1034, %v1290
        %v1355 = vsel %vm1099, %v1035, %v1291
        %v1356 = vsel %vm1100, %v1036, %v1292
        %v1357 = vsel %vm1101, %v1037, %v1293
        %v1358 = vsel %vm1102, %v1038, %v1294
        %v1359 = vsel %vm1103, %v1039, %v1295
        %v1360 = vsel %vm1104, %v1040, %v1296
        %v1361 = vsel %vm1105, %v1041, %v1297
        %v1362 = vsel %vm1106, %v1042, %v1298
        %v1363 = vsel %vm1107, %v1043, %v1299
        %v1364 = vsel %vm1108, %v1044, %v1300
        %v1365 = vsel %vm1109, %v1045, %v1301
        %v1366 = vsel %vm1110, %v1046, %v1302
        %v1367 = vsel %vm1111, %v1047, %v1303
        %v1368 = vsel %vm1112, %v1048, %v1304
        %v1369 = vsel %vm1113, %v1049, %v1305
        %v1370 = vsel %vm1114, %v1050, %v1306
        %v1371 = vsel %vm1115, %v1051, %v1307
        %v1372 = vsel %vm1116, %v1052, %v1308
        %v1373 = vsel %vm1117, %v1053, %v1309
        %v1374 = vsel %vm1118, %v1054, %v1310
        %v1375 = vsel %vm1119, %v1055, %v1311
        %v1376 = vsel %vm1120, %v1056, %v1312
        %v1377 = vsel %vm1121, %v1057, %v1313
        %v1378 = vsel %vm1122, %v1058, %v1314
        %v1379 = vsel %vm1123, %v1059, %v1315
        %v1380 = vsel %vm1124, %v1060, %v1316
        %v1381 = vsel %vm1125, %v1061, %v1317
        %v1382 = vsel %vm1126, %v1062, %v1318
        %v1383 = vsel %vm1127, %v1063, %v1319
        %v1384 = vsel %vm1128, %v1064, %v1320
        %v1385 = vsel %vm1129, %v1065, %v1321
        %v1386 = vsel %vm1130, %v1066, %v1322
        %v1387 = vsel %vm1131, %v1067, %v1323
        %v1388 = vsel %vm1132, %v1068, %v1324
        %v1389 = vsel %vm1133, %v1069, %v1325
        %v1390 = vsel %vm1134, %v1070, %v1326
        %v1391 = vsel %vm1135, %v1071, %v1327
        %v1392 = vsel %vm1136, %v1072, %v1328
        %v1393 = vsel %vm1137, %v1073, %v1329
        %v1394 = vsel %vm1138, %v1074, %v1330
        %v1395 = vsel %vm1139, %v1075, %v1331
        %v1396 = vpack.c.bf16 %v1334, %v1332
        %v1397 = vpack.c.bf16 %v1335, %v1333
        %v1398 = vpack.c.bf16 %v1338, %v1336
        %v1399 = vpack.c.bf16 %v1339, %v1337
        %v1400 = vpack.c.bf16 %v1342, %v1340
        %v1401 = vpack.c.bf16 %v1343, %v1341
        %v1402 = vpack.c.bf16 %v1346, %v1344
        %v1403 = vpack.c.bf16 %v1347, %v1345
        %v1404 = vpack.c.bf16 %v1350, %v1348
        %v1405 = vpack.c.bf16 %v1351, %v1349
        %v1406 = vpack.c.bf16 %v1354, %v1352
        %v1407 = vpack.c.bf16 %v1355, %v1353
        %v1408 = vpack.c.bf16 %v1358, %v1356
        %v1409 = vpack.c.bf16 %v1359, %v1357
        %v1410 = vpack.c.bf16 %v1362, %v1360
        %v1411 = vpack.c.bf16 %v1363, %v1361
        %v1412 = vpack.c.bf16 %v1366, %v1364
        %v1413 = vpack.c.bf16 %v1367, %v1365
        %v1414 = vpack.c.bf16 %v1370, %v1368
        %v1415 = vpack.c.bf16 %v1371, %v1369
        %v1416 = vpack.c.bf16 %v1374, %v1372
        %v1417 = vpack.c.bf16 %v1375, %v1373
        %v1418 = vpack.c.bf16 %v1378, %v1376
        %v1419 = vpack.c.bf16 %v1379, %v1377
        %v1420 = vpack.c.bf16 %v1382, %v1380
        %v1421 = vpack.c.bf16 %v1383, %v1381
        %v1422 = vpack.c.bf16 %v1386, %v1384
        %v1423 = vpack.c.bf16 %v1387, %v1385
        %v1424 = vpack.c.bf16 %v1390, %v1388
        %v1425 = vpack.c.bf16 %v1391, %v1389
        %v1426 = vpack.c.bf16 %v1394, %v1392
        %v1427 = vpack.c.bf16 %v1395, %v1393
        %v1428 = vld [vmem:[%s4] sm:$0xff]
        %v1429 = vld [vmem:[%s4 + $0x8] sm:$0xff]
        %v1430 = vld [vmem:[%s4 + $0x10] sm:$0xff]
        %v1431 = vld [vmem:[%s4 + $0x18] sm:$0xff]
        %v1432 = vld [vmem:[%s4 + $0x20] sm:$0xff]
        %v1433 = vld [vmem:[%s4 + $0x28] sm:$0xff]
        %v1434 = vld [vmem:[%s4 + $0x30] sm:$0xff]
        %v1435 = vld [vmem:[%s4 + $0x38] sm:$0xff]
        %v1436 = vld [vmem:[%s4 + $0x40] sm:$0xff]
        %v1437 = vld [vmem:[%s4 + $0x48] sm:$0xff]
        %v1438 = vld [vmem:[%s4 + $0x50] sm:$0xff]
        %v1439 = vld [vmem:[%s4 + $0x58] sm:$0xff]
        %v1440 = vld [vmem:[%s4 + $0x60] sm:$0xff]
        %v1441 = vld [vmem:[%s4 + $0x68] sm:$0xff]
        %v1442 = vld [vmem:[%s4 + $0x70] sm:$0xff]
        %v1443 = vld [vmem:[%s4 + $0x78] sm:$0xff]
        %v1444 = vld [vmem:[%s4 + $0x80] sm:$0xff]
        %v1445 = vld [vmem:[%s4 + $0x88] sm:$0xff]
        %v1446 = vld [vmem:[%s4 + $0x90] sm:$0xff]
        %v1447 = vld [vmem:[%s4 + $0x98] sm:$0xff]
        %v1448 = vld [vmem:[%s4 + $0xa0] sm:$0xff]
        %v1449 = vld [vmem:[%s4 + $0xa8] sm:$0xff]
        %v1450 = vld [vmem:[%s4 + $0xb0] sm:$0xff]
        %v1451 = vld [vmem:[%s4 + $0xb8] sm:$0xff]
        %v1452 = vld [vmem:[%s4 + $0xc0] sm:$0xff]
        %v1453 = vld [vmem:[%s4 + $0xc8] sm:$0xff]
        %v1454 = vld [vmem:[%s4 + $0xd0] sm:$0xff]
        %v1455 = vld [vmem:[%s4 + $0xd8] sm:$0xff]
        %v1456 = vld [vmem:[%s4 + $0xe0] sm:$0xff]
        %v1457 = vld [vmem:[%s4 + $0xe8] sm:$0xff]
        %v1458 = vld [vmem:[%s4 + $0xf0] sm:$0xff]
        %v1459 = vld [vmem:[%s4 + $0xf8] sm:$0xff]
        %v1461 = vlaneseq
        %v1462 = vshrl.u32 %v1461, 7
        %v1463 = vsub.s32 0, %v1462
        %v1464 = vrot.slane %v348, %v1463
        %v1465 = vlaneseq
        %v1466 = vshrl.u32 %v1465, 7
        %v1467 = vsub.s32 1, %v1466
        %v1468 = vrot.slane %v348, %v1467
        %v1503 = vunpack.c.l.b16 %v1428
        %v1504 = vunpack.c.h.b16 %v1428
        %v1505 = vunpack.c.l.b16 %v1429
        %v1506 = vunpack.c.h.b16 %v1429
        %v1507 = vunpack.c.l.b16 %v1430
        %v1508 = vunpack.c.h.b16 %v1430
        %v1509 = vunpack.c.l.b16 %v1431
        %v1510 = vunpack.c.h.b16 %v1431
        %v1511 = vunpack.c.l.b16 %v1432
        %v1512 = vunpack.c.h.b16 %v1432
        %v1513 = vunpack.c.l.b16 %v1433
        %v1514 = vunpack.c.h.b16 %v1433
        %v1515 = vunpack.c.l.b16 %v1434
        %v1516 = vunpack.c.h.b16 %v1434
        %v1517 = vunpack.c.l.b16 %v1435
        %v1518 = vunpack.c.h.b16 %v1435
        %v1519 = vunpack.c.l.b16 %v1436
        %v1520 = vunpack.c.h.b16 %v1436
        %v1521 = vunpack.c.l.b16 %v1437
        %v1522 = vunpack.c.h.b16 %v1437
        %v1523 = vunpack.c.l.b16 %v1438
        %v1524 = vunpack.c.h.b16 %v1438
        %v1525 = vunpack.c.l.b16 %v1439
        %v1526 = vunpack.c.h.b16 %v1439
        %v1527 = vunpack.c.l.b16 %v1440
        %v1528 = vunpack.c.h.b16 %v1440
        %v1529 = vunpack.c.l.b16 %v1441
        %v1530 = vunpack.c.h.b16 %v1441
        %v1531 = vunpack.c.l.b16 %v1442
        %v1532 = vunpack.c.h.b16 %v1442
        %v1533 = vunpack.c.l.b16 %v1443
        %v1534 = vunpack.c.h.b16 %v1443
        %v1535 = vunpack.c.l.b16 %v1444
        %v1536 = vunpack.c.h.b16 %v1444
        %v1537 = vunpack.c.l.b16 %v1445
        %v1538 = vunpack.c.h.b16 %v1445
        %v1539 = vunpack.c.l.b16 %v1446
        %v1540 = vunpack.c.h.b16 %v1446
        %v1541 = vunpack.c.l.b16 %v1447
        %v1542 = vunpack.c.h.b16 %v1447
        %v1543 = vunpack.c.l.b16 %v1448
        %v1544 = vunpack.c.h.b16 %v1448
        %v1545 = vunpack.c.l.b16 %v1449
        %v1546 = vunpack.c.h.b16 %v1449
        %v1547 = vunpack.c.l.b16 %v1450
        %v1548 = vunpack.c.h.b16 %v1450
        %v1549 = vunpack.c.l.b16 %v1451
        %v1550 = vunpack.c.h.b16 %v1451
        %v1551 = vunpack.c.l.b16 %v1452
        %v1552 = vunpack.c.h.b16 %v1452
        %v1553 = vunpack.c.l.b16 %v1453
        %v1554 = vunpack.c.h.b16 %v1453
        %v1555 = vunpack.c.l.b16 %v1454
        %v1556 = vunpack.c.h.b16 %v1454
        %v1557 = vunpack.c.l.b16 %v1455
        %v1558 = vunpack.c.h.b16 %v1455
        %v1559 = vunpack.c.l.b16 %v1456
        %v1560 = vunpack.c.h.b16 %v1456
        %v1561 = vunpack.c.l.b16 %v1457
        %v1562 = vunpack.c.h.b16 %v1457
        %v1563 = vunpack.c.l.b16 %v1458
        %v1564 = vunpack.c.h.b16 %v1458
        %v1565 = vunpack.c.l.b16 %v1459
        %v1566 = vunpack.c.h.b16 %v1459
        %v1567 = vpack.c.b16 %v1505, %v1503
        %v1568 = vpack.c.b16 %v1506, %v1504
        %v1569 = vpack.c.b16 %v1509, %v1507
        %v1570 = vpack.c.b16 %v1510, %v1508
        %v1571 = vpack.c.b16 %v1513, %v1511
        %v1572 = vpack.c.b16 %v1514, %v1512
        %v1573 = vpack.c.b16 %v1517, %v1515
        %v1574 = vpack.c.b16 %v1518, %v1516
        %v1575 = vpack.c.b16 %v1521, %v1519
        %v1576 = vpack.c.b16 %v1522, %v1520
        %v1577 = vpack.c.b16 %v1525, %v1523
        %v1578 = vpack.c.b16 %v1526, %v1524
        %v1579 = vpack.c.b16 %v1529, %v1527
        %v1580 = vpack.c.b16 %v1530, %v1528
        %v1581 = vpack.c.b16 %v1533, %v1531
        %v1582 = vpack.c.b16 %v1534, %v1532
        %v1583 = vpack.c.b16 %v1537, %v1535
        %v1584 = vpack.c.b16 %v1538, %v1536
        %v1585 = vpack.c.b16 %v1541, %v1539
        %v1586 = vpack.c.b16 %v1542, %v1540
        %v1587 = vpack.c.b16 %v1545, %v1543
        %v1588 = vpack.c.b16 %v1546, %v1544
        %v1589 = vpack.c.b16 %v1549, %v1547
        %v1590 = vpack.c.b16 %v1550, %v1548
        %v1591 = vpack.c.b16 %v1553, %v1551
        %v1592 = vpack.c.b16 %v1554, %v1552
        %v1593 = vpack.c.b16 %v1557, %v1555
        %v1594 = vpack.c.b16 %v1558, %v1556
        %v1595 = vpack.c.b16 %v1561, %v1559
        %v1596 = vpack.c.b16 %v1562, %v1560
        %v1597 = vpack.c.b16 %v1565, %v1563
        %v1598 = vpack.c.b16 %v1566, %v1564
        %1631 = vmatprep.subr.bf16.mxu0 %v1568
        %1632 = vmatpush1.bf16.msra.mxu0 %v1567
        %1633 = vmatprep.subr.bf16.mxu0 %v1570
        %1634 = vmatpush1.bf16.msra.mxu0 %v1569
        %1635 = vmatprep.subr.bf16.mxu0 %v1572
        %1636 = vmatpush1.bf16.msra.mxu0 %v1571
        %1637 = vmatprep.subr.bf16.mxu0 %v1574
        %1638 = vmatpush1.bf16.msra.mxu0 %v1573
        %1639 = vmatprep.subr.bf16.mxu0 %v1576
        %1640 = vmatpush1.bf16.msra.mxu0 %v1575
        %1641 = vmatprep.subr.bf16.mxu0 %v1578
        %1642 = vmatpush1.bf16.msra.mxu0 %v1577
        %1643 = vmatprep.subr.bf16.mxu0 %v1580
        %1644 = vmatpush1.bf16.msra.mxu0 %v1579
        %1645 = vmatprep.subr.bf16.mxu0 %v1582
        %1646 = vmatpush1.bf16.msra.mxu0 %v1581
        %1647 = vmatprep.subr.bf16.mxu0 %v1584
        %1648 = vmatpush1.bf16.msra.mxu0 %v1583
        %1649 = vmatprep.subr.bf16.mxu0 %v1586
        %1650 = vmatpush1.bf16.msra.mxu0 %v1585
        %1651 = vmatprep.subr.bf16.mxu0 %v1588
        %1652 = vmatpush1.bf16.msra.mxu0 %v1587
        %1653 = vmatprep.subr.bf16.mxu0 %v1590
        %1654 = vmatpush1.bf16.msra.mxu0 %v1589
        %1655 = vmatprep.subr.bf16.mxu0 %v1592
        %1656 = vmatpush1.bf16.msra.mxu0 %v1591
        %1657 = vmatprep.subr.bf16.mxu0 %v1594
        %1658 = vmatpush1.bf16.msra.mxu0 %v1593
        %1659 = vmatprep.subr.bf16.mxu0 %v1596
        %1660 = vmatpush1.bf16.msra.mxu0 %v1595
        %1661 = vmatprep.subr.bf16.mxu0 %v1598
        %1662 = vmatpush1.bf16.msra.mxu0 %v1597
        %1663 = vmatprep.mubr.bf16.mxu0 %v1397
        %1664 = vmatmul.mubr.bf16.gmra.mrb[0].mxu0 %v1396
        %v1665 = vpop.f32.mrb[0].mxu0
        %v1666 = vadd.f32 %v1464, %v1665
        %v1667 = vpop.f32.mrb[0].mxu0
        %v1668 = vadd.f32 %v1468, %v1667
        %v1669 = vpop.f32.mrb[0].mxu0
        %v1670 = vadd.f32 %v1464, %v1669
        %v1671 = vpop.f32.mrb[0].mxu0
        %v1672 = vadd.f32 %v1468, %v1671
        %1673 = vmatprep.mubr.bf16.mxu0 %v1399
        %1674 = vmatmul.mubr.bf16.gmra.mrb[0].mxu0 %v1398
        %v1675 = vpop.f32.mrb[0].mxu0
        %v1676 = vadd.f32 %v1464, %v1675
        %v1677 = vpop.f32.mrb[0].mxu0
        %v1678 = vadd.f32 %v1468, %v1677
        %v1679 = vpop.f32.mrb[0].mxu0
        %v1680 = vadd.f32 %v1464, %v1679
        %v1681 = vpop.f32.mrb[0].mxu0
        %v1682 = vadd.f32 %v1468, %v1681
        %1683 = vmatprep.mubr.bf16.mxu0 %v1401
        %1684 = vmatmul.mubr.bf16.gmra.mrb[0].mxu0 %v1400
        %v1685 = vpop.f32.mrb[0].mxu0
        %v1686 = vadd.f32 %v1464, %v1685
        %v1687 = vpop.f32.mrb[0].mxu0
        %v1688 = vadd.f32 %v1468, %v1687
        %v1689 = vpop.f32.mrb[0].mxu0
        %v1690 = vadd.f32 %v1464, %v1689
        %v1691 = vpop.f32.mrb[0].mxu0
        %v1692 = vadd.f32 %v1468, %v1691
        %1693 = vmatprep.mubr.bf16.mxu0 %v1403
        %1694 = vmatmul.mubr.bf16.gmra.mrb[0].mxu0 %v1402
        %v1695 = vpop.f32.mrb[0].mxu0
        %v1696 = vadd.f32 %v1464, %v1695
        %v1697 = vpop.f32.mrb[0].mxu0
        %v1698 = vadd.f32 %v1468, %v1697
        %v1699 = vpop.f32.mrb[0].mxu0
        %v1700 = vadd.f32 %v1464, %v1699
        %v1701 = vpop.f32.mrb[0].mxu0
        %v1702 = vadd.f32 %v1468, %v1701
        %1703 = vmatprep.mubr.bf16.mxu0 %v1405
        %1704 = vmatmul.mubr.bf16.gmra.mrb[0].mxu0 %v1404
        %v1705 = vpop.f32.mrb[0].mxu0
        %v1706 = vadd.f32 %v1464, %v1705
        %v1707 = vpop.f32.mrb[0].mxu0
        %v1708 = vadd.f32 %v1468, %v1707
        %v1709 = vpop.f32.mrb[0].mxu0
        %v1710 = vadd.f32 %v1464, %v1709
        %v1711 = vpop.f32.mrb[0].mxu0
        %v1712 = vadd.f32 %v1468, %v1711
        %1713 = vmatprep.mubr.bf16.mxu0 %v1407
        %1714 = vmatmul.mubr.bf16.gmra.mrb[0].mxu0 %v1406
        %v1715 = vpop.f32.mrb[0].mxu0
        %v1716 = vadd.f32 %v1464, %v1715
        %v1717 = vpop.f32.mrb[0].mxu0
        %v1718 = vadd.f32 %v1468, %v1717
        %v1719 = vpop.f32.mrb[0].mxu0
        %v1720 = vadd.f32 %v1464, %v1719
        %v1721 = vpop.f32.mrb[0].mxu0
        %v1722 = vadd.f32 %v1468, %v1721
        %1723 = vmatprep.mubr.bf16.mxu0 %v1409
        %1724 = vmatmul.mubr.bf16.gmra.mrb[0].mxu0 %v1408
        %v1725 = vpop.f32.mrb[0].mxu0
        %v1726 = vadd.f32 %v1464, %v1725
        %v1727 = vpop.f32.mrb[0].mxu0
        %v1728 = vadd.f32 %v1468, %v1727
        %v1729 = vpop.f32.mrb[0].mxu0
        %v1730 = vadd.f32 %v1464, %v1729
        %v1731 = vpop.f32.mrb[0].mxu0
        %v1732 = vadd.f32 %v1468, %v1731
        %1733 = vmatprep.mubr.bf16.mxu0 %v1411
        %1734 = vmatmul.mubr.bf16.gmra.mrb[0].mxu0 %v1410
        %v1735 = vpop.f32.mrb[0].mxu0
        %v1736 = vadd.f32 %v1464, %v1735
        %v1737 = vpop.f32.mrb[0].mxu0
        %v1738 = vadd.f32 %v1468, %v1737
        %v1739 = vpop.f32.mrb[0].mxu0
        %v1740 = vadd.f32 %v1464, %v1739
        %v1741 = vpop.f32.mrb[0].mxu0
        %v1742 = vadd.f32 %v1468, %v1741
        %1743 = vmatprep.mubr.bf16.mxu0 %v1413
        %1744 = vmatmul.mubr.bf16.gmra.mrb[0].mxu0 %v1412
        %v1745 = vpop.f32.mrb[0].mxu0
        %v1746 = vadd.f32 %v1464, %v1745
        %v1747 = vpop.f32.mrb[0].mxu0
        %v1748 = vadd.f32 %v1468, %v1747
        %v1749 = vpop.f32.mrb[0].mxu0
        %v1750 = vadd.f32 %v1464, %v1749
        %v1751 = vpop.f32.mrb[0].mxu0
        %v1752 = vadd.f32 %v1468, %v1751
        %1753 = vmatprep.mubr.bf16.mxu0 %v1415
        %1754 = vmatmul.mubr.bf16.gmra.mrb[0].mxu0 %v1414
        %v1755 = vpop.f32.mrb[0].mxu0
        %v1756 = vadd.f32 %v1464, %v1755
        %v1757 = vpop.f32.mrb[0].mxu0
        %v1758 = vadd.f32 %v1468, %v1757
        %v1759 = vpop.f32.mrb[0].mxu0
        %v1760 = vadd.f32 %v1464, %v1759
        %v1761 = vpop.f32.mrb[0].mxu0
        %v1762 = vadd.f32 %v1468, %v1761
        %1763 = vmatprep.mubr.bf16.mxu0 %v1417
        %1764 = vmatmul.mubr.bf16.gmra.mrb[0].mxu0 %v1416
        %v1765 = vpop.f32.mrb[0].mxu0
        %v1766 = vadd.f32 %v1464, %v1765
        %v1767 = vpop.f32.mrb[0].mxu0
        %v1768 = vadd.f32 %v1468, %v1767
        %v1769 = vpop.f32.mrb[0].mxu0
        %v1770 = vadd.f32 %v1464, %v1769
        %v1771 = vpop.f32.mrb[0].mxu0
        %v1772 = vadd.f32 %v1468, %v1771
        %1773 = vmatprep.mubr.bf16.mxu0 %v1419
        %1774 = vmatmul.mubr.bf16.gmra.mrb[0].mxu0 %v1418
        %v1775 = vpop.f32.mrb[0].mxu0
        %v1776 = vadd.f32 %v1464, %v1775
        %v1777 = vpop.f32.mrb[0].mxu0
        %v1778 = vadd.f32 %v1468, %v1777
        %v1779 = vpop.f32.mrb[0].mxu0
        %v1780 = vadd.f32 %v1464, %v1779
        %v1781 = vpop.f32.mrb[0].mxu0
        %v1782 = vadd.f32 %v1468, %v1781
        %1783 = vmatprep.mubr.bf16.mxu0 %v1421
        %1784 = vmatmul.mubr.bf16.gmra.mrb[0].mxu0 %v1420
        %v1785 = vpop.f32.mrb[0].mxu0
        %v1786 = vadd.f32 %v1464, %v1785
        %v1787 = vpop.f32.mrb[0].mxu0
        %v1788 = vadd.f32 %v1468, %v1787
        %v1789 = vpop.f32.mrb[0].mxu0
        %v1790 = vadd.f32 %v1464, %v1789
        %v1791 = vpop.f32.mrb[0].mxu0
        %v1792 = vadd.f32 %v1468, %v1791
        %1793 = vmatprep.mubr.bf16.mxu0 %v1423
        %1794 = vmatmul.mubr.bf16.gmra.mrb[0].mxu0 %v1422
        %v1795 = vpop.f32.mrb[0].mxu0
        %v1796 = vadd.f32 %v1464, %v1795
        %v1797 = vpop.f32.mrb[0].mxu0
        %v1798 = vadd.f32 %v1468, %v1797
        %v1799 = vpop.f32.mrb[0].mxu0
        %v1800 = vadd.f32 %v1464, %v1799
        %v1801 = vpop.f32.mrb[0].mxu0
        %v1802 = vadd.f32 %v1468, %v1801
        %1803 = vmatprep.mubr.bf16.mxu0 %v1425
        %1804 = vmatmul.mubr.bf16.gmra.mrb[0].mxu0 %v1424
        %v1805 = vpop.f32.mrb[0].mxu0
        %v1806 = vadd.f32 %v1464, %v1805
        %v1807 = vpop.f32.mrb[0].mxu0
        %v1808 = vadd.f32 %v1468, %v1807
        %v1809 = vpop.f32.mrb[0].mxu0
        %v1810 = vadd.f32 %v1464, %v1809
        %v1811 = vpop.f32.mrb[0].mxu0
        %v1812 = vadd.f32 %v1468, %v1811
        %1813 = vmatprep.mubr.bf16.mxu0 %v1427
        %1814 = vmatmul.mubr.bf16.gmra.mrb[0].mxu0 %v1426
        %v1815 = vpop.f32.mrb[0].mxu0
        %v1816 = vadd.f32 %v1464, %v1815
        %v1817 = vpop.f32.mrb[0].mxu0
        %v1818 = vadd.f32 %v1468, %v1817
        %v1819 = vpop.f32.mrb[0].mxu0
        %v1820 = vadd.f32 %v1464, %v1819
        %v1821 = vpop.f32.mrb[0].mxu0
        %v1822 = vadd.f32 %v1468, %v1821
        %1823 = vdwg.mxu0
        %vm1824 = vcmp.gt.f32.partialorder %v1666, 0.0
        %vm1825 = vcmp.gt.f32.partialorder %v1668, 0.0
        %vm1826 = vcmp.gt.f32.partialorder %v1670, 0.0
        %vm1827 = vcmp.gt.f32.partialorder %v1672, 0.0
        %vm1828 = vcmp.gt.f32.partialorder %v1676, 0.0
        %vm1829 = vcmp.gt.f32.partialorder %v1678, 0.0
        %vm1830 = vcmp.gt.f32.partialorder %v1680, 0.0
        %vm1831 = vcmp.gt.f32.partialorder %v1682, 0.0
        %vm1832 = vcmp.gt.f32.partialorder %v1686, 0.0
        %vm1833 = vcmp.gt.f32.partialorder %v1688, 0.0
        %vm1834 = vcmp.gt.f32.partialorder %v1690, 0.0
        %vm1835 = vcmp.gt.f32.partialorder %v1692, 0.0
        %vm1836 = vcmp.gt.f32.partialorder %v1696, 0.0
        %vm1837 = vcmp.gt.f32.partialorder %v1698, 0.0
        %vm1838 = vcmp.gt.f32.partialorder %v1700, 0.0
        %vm1839 = vcmp.gt.f32.partialorder %v1702, 0.0
        %vm1840 = vcmp.gt.f32.partialorder %v1706, 0.0
        %vm1841 = vcmp.gt.f32.partialorder %v1708, 0.0
        %vm1842 = vcmp.gt.f32.partialorder %v1710, 0.0
        %vm1843 = vcmp.gt.f32.partialorder %v1712, 0.0
        %vm1844 = vcmp.gt.f32.partialorder %v1716, 0.0
        %vm1845 = vcmp.gt.f32.partialorder %v1718, 0.0
        %vm1846 = vcmp.gt.f32.partialorder %v1720, 0.0
        %vm1847 = vcmp.gt.f32.partialorder %v1722, 0.0
        %vm1848 = vcmp.gt.f32.partialorder %v1726, 0.0
        %vm1849 = vcmp.gt.f32.partialorder %v1728, 0.0
        %vm1850 = vcmp.gt.f32.partialorder %v1730, 0.0
        %vm1851 = vcmp.gt.f32.partialorder %v1732, 0.0
        %vm1852 = vcmp.gt.f32.partialorder %v1736, 0.0
        %vm1853 = vcmp.gt.f32.partialorder %v1738, 0.0
        %vm1854 = vcmp.gt.f32.partialorder %v1740, 0.0
        %vm1855 = vcmp.gt.f32.partialorder %v1742, 0.0
        %vm1856 = vcmp.gt.f32.partialorder %v1746, 0.0
        %vm1857 = vcmp.gt.f32.partialorder %v1748, 0.0
        %vm1858 = vcmp.gt.f32.partialorder %v1750, 0.0
        %vm1859 = vcmp.gt.f32.partialorder %v1752, 0.0
        %vm1860 = vcmp.gt.f32.partialorder %v1756, 0.0
        %vm1861 = vcmp.gt.f32.partialorder %v1758, 0.0
        %vm1862 = vcmp.gt.f32.partialorder %v1760, 0.0
        %vm1863 = vcmp.gt.f32.partialorder %v1762, 0.0
        %vm1864 = vcmp.gt.f32.partialorder %v1766, 0.0
        %vm1865 = vcmp.gt.f32.partialorder %v1768, 0.0
        %vm1866 = vcmp.gt.f32.partialorder %v1770, 0.0
        %vm1867 = vcmp.gt.f32.partialorder %v1772, 0.0
        %vm1868 = vcmp.gt.f32.partialorder %v1776, 0.0
        %vm1869 = vcmp.gt.f32.partialorder %v1778, 0.0
        %vm1870 = vcmp.gt.f32.partialorder %v1780, 0.0
        %vm1871 = vcmp.gt.f32.partialorder %v1782, 0.0
        %vm1872 = vcmp.gt.f32.partialorder %v1786, 0.0
        %vm1873 = vcmp.gt.f32.partialorder %v1788, 0.0
        %vm1874 = vcmp.gt.f32.partialorder %v1790, 0.0
        %vm1875 = vcmp.gt.f32.partialorder %v1792, 0.0
        %vm1876 = vcmp.gt.f32.partialorder %v1796, 0.0
        %vm1877 = vcmp.gt.f32.partialorder %v1798, 0.0
        %vm1878 = vcmp.gt.f32.partialorder %v1800, 0.0
        %vm1879 = vcmp.gt.f32.partialorder %v1802, 0.0
        %vm1880 = vcmp.gt.f32.partialorder %v1806, 0.0
        %vm1881 = vcmp.gt.f32.partialorder %v1808, 0.0
        %vm1882 = vcmp.gt.f32.partialorder %v1810, 0.0
        %vm1883 = vcmp.gt.f32.partialorder %v1812, 0.0
        %vm1884 = vcmp.gt.f32.partialorder %v1816, 0.0
        %vm1885 = vcmp.gt.f32.partialorder %v1818, 0.0
        %vm1886 = vcmp.gt.f32.partialorder %v1820, 0.0
        %vm1887 = vcmp.gt.f32.partialorder %v1822, 0.0
        %v1888 = vmul.f32 %v1666, 1.442695
        %v1889 = vpow.pop %v1888
        %v1890 = vmul.f32 %v1668, 1.442695
        %v1891 = vpow.pop %v1890
        %v1892 = vmul.f32 %v1670, 1.442695
        %v1893 = vpow.pop %v1892
        %v1894 = vmul.f32 %v1672, 1.442695
        %v1895 = vpow.pop %v1894
        %v1896 = vmul.f32 %v1676, 1.442695
        %v1897 = vpow.pop %v1896
        %v1898 = vmul.f32 %v1678, 1.442695
        %v1899 = vpow.pop %v1898
        %v1900 = vmul.f32 %v1680, 1.442695
        %v1901 = vpow.pop %v1900
        %v1902 = vmul.f32 %v1682, 1.442695
        %v1903 = vpow.pop %v1902
        %v1904 = vmul.f32 %v1686, 1.442695
        %v1905 = vpow.pop %v1904
        %v1906 = vmul.f32 %v1688, 1.442695
        %v1907 = vpow.pop %v1906
        %v1908 = vmul.f32 %v1690, 1.442695
        %v1909 = vpow.pop %v1908
        %v1910 = vmul.f32 %v1692, 1.442695
        %v1911 = vpow.pop %v1910
        %v1912 = vmul.f32 %v1696, 1.442695
        %v1913 = vpow.pop %v1912
        %v1914 = vmul.f32 %v1698, 1.442695
        %v1915 = vpow.pop %v1914
        %v1916 = vmul.f32 %v1700, 1.442695
        %v1917 = vpow.pop %v1916
        %v1918 = vmul.f32 %v1702, 1.442695
        %v1919 = vpow.pop %v1918
        %v1920 = vmul.f32 %v1706, 1.442695
        %v1921 = vpow.pop %v1920
        %v1922 = vmul.f32 %v1708, 1.442695
        %v1923 = vpow.pop %v1922
        %v1924 = vmul.f32 %v1710, 1.442695
        %v1925 = vpow.pop %v1924
        %v1926 = vmul.f32 %v1712, 1.442695
        %v1927 = vpow.pop %v1926
        %v1928 = vmul.f32 %v1716, 1.442695
        %v1929 = vpow.pop %v1928
        %v1930 = vmul.f32 %v1718, 1.442695
        %v1931 = vpow.pop %v1930
        %v1932 = vmul.f32 %v1720, 1.442695
        %v1933 = vpow.pop %v1932
        %v1934 = vmul.f32 %v1722, 1.442695
        %v1935 = vpow.pop %v1934
        %v1936 = vmul.f32 %v1726, 1.442695
        %v1937 = vpow.pop %v1936
        %v1938 = vmul.f32 %v1728, 1.442695
        %v1939 = vpow.pop %v1938
        %v1940 = vmul.f32 %v1730, 1.442695
        %v1941 = vpow.pop %v1940
        %v1942 = vmul.f32 %v1732, 1.442695
        %v1943 = vpow.pop %v1942
        %v1944 = vmul.f32 %v1736, 1.442695
        %v1945 = vpow.pop %v1944
        %v1946 = vmul.f32 %v1738, 1.442695
        %v1947 = vpow.pop %v1946
        %v1948 = vmul.f32 %v1740, 1.442695
        %v1949 = vpow.pop %v1948
        %v1950 = vmul.f32 %v1742, 1.442695
        %v1951 = vpow.pop %v1950
        %v1952 = vmul.f32 %v1746, 1.442695
        %v1953 = vpow.pop %v1952
        %v1954 = vmul.f32 %v1748, 1.442695
        %v1955 = vpow.pop %v1954
        %v1956 = vmul.f32 %v1750, 1.442695
        %v1957 = vpow.pop %v1956
        %v1958 = vmul.f32 %v1752, 1.442695
        %v1959 = vpow.pop %v1958
        %v1960 = vmul.f32 %v1756, 1.442695
        %v1961 = vpow.pop %v1960
        %v1962 = vmul.f32 %v1758, 1.442695
        %v1963 = vpow.pop %v1962
        %v1964 = vmul.f32 %v1760, 1.442695
        %v1965 = vpow.pop %v1964
        %v1966 = vmul.f32 %v1762, 1.442695
        %v1967 = vpow.pop %v1966
        %v1968 = vmul.f32 %v1766, 1.442695
        %v1969 = vpow.pop %v1968
        %v1970 = vmul.f32 %v1768, 1.442695
        %v1971 = vpow.pop %v1970
        %v1972 = vmul.f32 %v1770, 1.442695
        %v1973 = vpow.pop %v1972
        %v1974 = vmul.f32 %v1772, 1.442695
        %v1975 = vpow.pop %v1974
        %v1976 = vmul.f32 %v1776, 1.442695
        %v1977 = vpow.pop %v1976
        %v1978 = vmul.f32 %v1778, 1.442695
        %v1979 = vpow.pop %v1978
        %v1980 = vmul.f32 %v1780, 1.442695
        %v1981 = vpow.pop %v1980
        %v1982 = vmul.f32 %v1782, 1.442695
        %v1983 = vpow.pop %v1982
        %v1984 = vmul.f32 %v1786, 1.442695
        %v1985 = vpow.pop %v1984
        %v1986 = vmul.f32 %v1788, 1.442695
        %v1987 = vpow.pop %v1986
        %v1988 = vmul.f32 %v1790, 1.442695
        %v1989 = vpow.pop %v1988
        %v1990 = vmul.f32 %v1792, 1.442695
        %v1991 = vpow.pop %v1990
        %v1992 = vmul.f32 %v1796, 1.442695
        %v1993 = vpow.pop %v1992
        %v1994 = vmul.f32 %v1798, 1.442695
        %v1995 = vpow.pop %v1994
        %v1996 = vmul.f32 %v1800, 1.442695
        %v1997 = vpow.pop %v1996
        %v1998 = vmul.f32 %v1802, 1.442695
        %v1999 = vpow.pop %v1998
        %v2000 = vmul.f32 %v1806, 1.442695
        %v2001 = vpow.pop %v2000
        %v2002 = vmul.f32 %v1808, 1.442695
        %v2003 = vpow.pop %v2002
        %v2004 = vmul.f32 %v1810, 1.442695
        %v2005 = vpow.pop %v2004
        %v2006 = vmul.f32 %v1812, 1.442695
        %v2007 = vpow.pop %v2006
        %v2008 = vmul.f32 %v1816, 1.442695
        %v2009 = vpow.pop %v2008
        %v2010 = vmul.f32 %v1818, 1.442695
        %v2011 = vpow.pop %v2010
        %v2012 = vmul.f32 %v1820, 1.442695
        %v2013 = vpow.pop %v2012
        %v2014 = vmul.f32 %v1822, 1.442695
        %v2015 = vpow.pop %v2014
        %v2016 = vsub.f32 %v1889, 1.0
        %v2017 = vsub.f32 %v1891, 1.0
        %v2018 = vsub.f32 %v1893, 1.0
        %v2019 = vsub.f32 %v1895, 1.0
        %v2020 = vsub.f32 %v1897, 1.0
        %v2021 = vsub.f32 %v1899, 1.0
        %v2022 = vsub.f32 %v1901, 1.0
        %v2023 = vsub.f32 %v1903, 1.0
        %v2024 = vsub.f32 %v1905, 1.0
        %v2025 = vsub.f32 %v1907, 1.0
        %v2026 = vsub.f32 %v1909, 1.0
        %v2027 = vsub.f32 %v1911, 1.0
        %v2028 = vsub.f32 %v1913, 1.0
        %v2029 = vsub.f32 %v1915, 1.0
        %v2030 = vsub.f32 %v1917, 1.0
        %v2031 = vsub.f32 %v1919, 1.0
        %v2032 = vsub.f32 %v1921, 1.0
        %v2033 = vsub.f32 %v1923, 1.0
        %v2034 = vsub.f32 %v1925, 1.0
        %v2035 = vsub.f32 %v1927, 1.0
        %v2036 = vsub.f32 %v1929, 1.0
        %v2037 = vsub.f32 %v1931, 1.0
        %v2038 = vsub.f32 %v1933, 1.0
        %v2039 = vsub.f32 %v1935, 1.0
        %v2040 = vsub.f32 %v1937, 1.0
        %v2041 = vsub.f32 %v1939, 1.0
        %v2042 = vsub.f32 %v1941, 1.0
        %v2043 = vsub.f32 %v1943, 1.0
        %v2044 = vsub.f32 %v1945, 1.0
        %v2045 = vsub.f32 %v1947, 1.0
        %v2046 = vsub.f32 %v1949, 1.0
        %v2047 = vsub.f32 %v1951, 1.0
        %v2048 = vsub.f32 %v1953, 1.0
        %v2049 = vsub.f32 %v1955, 1.0
        %v2050 = vsub.f32 %v1957, 1.0
        %v2051 = vsub.f32 %v1959, 1.0
        %v2052 = vsub.f32 %v1961, 1.0
        %v2053 = vsub.f32 %v1963, 1.0
        %v2054 = vsub.f32 %v1965, 1.0
        %v2055 = vsub.f32 %v1967, 1.0
        %v2056 = vsub.f32 %v1969, 1.0
        %v2057 = vsub.f32 %v1971, 1.0
        %v2058 = vsub.f32 %v1973, 1.0
        %v2059 = vsub.f32 %v1975, 1.0
        %v2060 = vsub.f32 %v1977, 1.0
        %v2061 = vsub.f32 %v1979, 1.0
        %v2062 = vsub.f32 %v1981, 1.0
        %v2063 = vsub.f32 %v1983, 1.0
        %v2064 = vsub.f32 %v1985, 1.0
        %v2065 = vsub.f32 %v1987, 1.0
        %v2066 = vsub.f32 %v1989, 1.0
        %v2067 = vsub.f32 %v1991, 1.0
        %v2068 = vsub.f32 %v1993, 1.0
        %v2069 = vsub.f32 %v1995, 1.0
        %v2070 = vsub.f32 %v1997, 1.0
        %v2071 = vsub.f32 %v1999, 1.0
        %v2072 = vsub.f32 %v2001, 1.0
        %v2073 = vsub.f32 %v2003, 1.0
        %v2074 = vsub.f32 %v2005, 1.0
        %v2075 = vsub.f32 %v2007, 1.0
        %v2076 = vsub.f32 %v2009, 1.0
        %v2077 = vsub.f32 %v2011, 1.0
        %v2078 = vsub.f32 %v2013, 1.0
        %v2079 = vsub.f32 %v2015, 1.0
        %v2080 = vsel %vm1824, %v1666, %v2016
        %v2081 = vsel %vm1825, %v1668, %v2017
        %v2082 = vsel %vm1826, %v1670, %v2018
        %v2083 = vsel %vm1827, %v1672, %v2019
        %v2084 = vsel %vm1828, %v1676, %v2020
        %v2085 = vsel %vm1829, %v1678, %v2021
        %v2086 = vsel %vm1830, %v1680, %v2022
        %v2087 = vsel %vm1831, %v1682, %v2023
        %v2088 = vsel %vm1832, %v1686, %v2024
        %v2089 = vsel %vm1833, %v1688, %v2025
        %v2090 = vsel %vm1834, %v1690, %v2026
        %v2091 = vsel %vm1835, %v1692, %v2027
        %v2092 = vsel %vm1836, %v1696, %v2028
        %v2093 = vsel %vm1837, %v1698, %v2029
        %v2094 = vsel %vm1838, %v1700, %v2030
        %v2095 = vsel %vm1839, %v1702, %v2031
        %v2096 = vsel %vm1840, %v1706, %v2032
        %v2097 = vsel %vm1841, %v1708, %v2033
        %v2098 = vsel %vm1842, %v1710, %v2034
        %v2099 = vsel %vm1843, %v1712, %v2035
        %v2100 = vsel %vm1844, %v1716, %v2036
        %v2101 = vsel %vm1845, %v1718, %v2037
        %v2102 = vsel %vm1846, %v1720, %v2038
        %v2103 = vsel %vm1847, %v1722, %v2039
        %v2104 = vsel %vm1848, %v1726, %v2040
        %v2105 = vsel %vm1849, %v1728, %v2041
        %v2106 = vsel %vm1850, %v1730, %v2042
        %v2107 = vsel %vm1851, %v1732, %v2043
        %v2108 = vsel %vm1852, %v1736, %v2044
        %v2109 = vsel %vm1853, %v1738, %v2045
        %v2110 = vsel %vm1854, %v1740, %v2046
        %v2111 = vsel %vm1855, %v1742, %v2047
        %v2112 = vsel %vm1856, %v1746, %v2048
        %v2113 = vsel %vm1857, %v1748, %v2049
        %v2114 = vsel %vm1858, %v1750, %v2050
        %v2115 = vsel %vm1859, %v1752, %v2051
        %v2116 = vsel %vm1860, %v1756, %v2052
        %v2117 = vsel %vm1861, %v1758, %v2053
        %v2118 = vsel %vm1862, %v1760, %v2054
        %v2119 = vsel %vm1863, %v1762, %v2055
        %v2120 = vsel %vm1864, %v1766, %v2056
        %v2121 = vsel %vm1865, %v1768, %v2057
        %v2122 = vsel %vm1866, %v1770, %v2058
        %v2123 = vsel %vm1867, %v1772, %v2059
        %v2124 = vsel %vm1868, %v1776, %v2060
        %v2125 = vsel %vm1869, %v1778, %v2061
        %v2126 = vsel %vm1870, %v1780, %v2062
        %v2127 = vsel %vm1871, %v1782, %v2063
        %v2128 = vsel %vm1872, %v1786, %v2064
        %v2129 = vsel %vm1873, %v1788, %v2065
        %v2130 = vsel %vm1874, %v1790, %v2066
        %v2131 = vsel %vm1875, %v1792, %v2067
        %v2132 = vsel %vm1876, %v1796, %v2068
        %v2133 = vsel %vm1877, %v1798, %v2069
        %v2134 = vsel %vm1878, %v1800, %v2070
        %v2135 = vsel %vm1879, %v1802, %v2071
        %v2136 = vsel %vm1880, %v1806, %v2072
        %v2137 = vsel %vm1881, %v1808, %v2073
        %v2138 = vsel %vm1882, %v1810, %v2074
        %v2139 = vsel %vm1883, %v1812, %v2075
        %v2140 = vsel %vm1884, %v1816, %v2076
        %v2141 = vsel %vm1885, %v1818, %v2077
        %v2142 = vsel %vm1886, %v1820, %v2078
        %v2143 = vsel %vm1887, %v1822, %v2079
        %2144 = vst [vmem:[%s243] sm:$0xff] %v2080
        %2145 = vst [vmem:[%s243 + $0x8] sm:$0xff] %v2081
        %2146 = vst [vmem:[%s243 + $0x10] sm:$0xff] %v2082
        %2147 = vst [vmem:[%s243 + $0x18] sm:$0xff] %v2083
        %2148 = vst [vmem:[%s243 + $0x20] sm:$0xff] %v2084
        %2149 = vst [vmem:[%s243 + $0x28] sm:$0xff] %v2085
        %2150 = vst [vmem:[%s243 + $0x30] sm:$0xff] %v2086
        %2151 = vst [vmem:[%s243 + $0x38] sm:$0xff] %v2087
        %2152 = vst [vmem:[%s243 + $0x40] sm:$0xff] %v2088
        %2153 = vst [vmem:[%s243 + $0x48] sm:$0xff] %v2089
        %2154 = vst [vmem:[%s243 + $0x50] sm:$0xff] %v2090
        %2155 = vst [vmem:[%s243 + $0x58] sm:$0xff] %v2091
        %2156 = vst [vmem:[%s243 + $0x60] sm:$0xff] %v2092
        %2157 = vst [vmem:[%s243 + $0x68] sm:$0xff] %v2093
        %2158 = vst [vmem:[%s243 + $0x70] sm:$0xff] %v2094
        %2159 = vst [vmem:[%s243 + $0x78] sm:$0xff] %v2095
        %2160 = vst [vmem:[%s243 + $0x80] sm:$0xff] %v2096
        %2161 = vst [vmem:[%s243 + $0x88] sm:$0xff] %v2097
        %2162 = vst [vmem:[%s243 + $0x90] sm:$0xff] %v2098
        %2163 = vst [vmem:[%s243 + $0x98] sm:$0xff] %v2099
        %2164 = vst [vmem:[%s243 + $0xa0] sm:$0xff] %v2100
        %2165 = vst [vmem:[%s243 + $0xa8] sm:$0xff] %v2101
        %2166 = vst [vmem:[%s243 + $0xb0] sm:$0xff] %v2102
        %2167 = vst [vmem:[%s243 + $0xb8] sm:$0xff] %v2103
        %2168 = vst [vmem:[%s243 + $0xc0] sm:$0xff] %v2104
        %2169 = vst [vmem:[%s243 + $0xc8] sm:$0xff] %v2105
        %2170 = vst [vmem:[%s243 + $0xd0] sm:$0xff] %v2106
        %2171 = vst [vmem:[%s243 + $0xd8] sm:$0xff] %v2107
        %2172 = vst [vmem:[%s243 + $0xe0] sm:$0xff] %v2108
        %2173 = vst [vmem:[%s243 + $0xe8] sm:$0xff] %v2109
        %2174 = vst [vmem:[%s243 + $0xf0] sm:$0xff] %v2110
        %2175 = vst [vmem:[%s243 + $0xf8] sm:$0xff] %v2111
        %2176 = vst [vmem:[%s243 + $0x100] sm:$0xff] %v2112
        %2177 = vst [vmem:[%s243 + $0x108] sm:$0xff] %v2113
        %2178 = vst [vmem:[%s243 + $0x110] sm:$0xff] %v2114
        %2179 = vst [vmem:[%s243 + $0x118] sm:$0xff] %v2115
        %2180 = vst [vmem:[%s243 + $0x120] sm:$0xff] %v2116
        %2181 = vst [vmem:[%s243 + $0x128] sm:$0xff] %v2117
        %2182 = vst [vmem:[%s243 + $0x130] sm:$0xff] %v2118
        %2183 = vst [vmem:[%s243 + $0x138] sm:$0xff] %v2119
        %2184 = vst [vmem:[%s243 + $0x140] sm:$0xff] %v2120
        %2185 = vst [vmem:[%s243 + $0x148] sm:$0xff] %v2121
        %2186 = vst [vmem:[%s243 + $0x150] sm:$0xff] %v2122
        %2187 = vst [vmem:[%s243 + $0x158] sm:$0xff] %v2123
        %2188 = vst [vmem:[%s243 + $0x160] sm:$0xff] %v2124
        %2189 = vst [vmem:[%s243 + $0x168] sm:$0xff] %v2125
        %2190 = vst [vmem:[%s243 + $0x170] sm:$0xff] %v2126
        %2191 = vst [vmem:[%s243 + $0x178] sm:$0xff] %v2127
        %2192 = vst [vmem:[%s243 + $0x180] sm:$0xff] %v2128
        %2193 = vst [vmem:[%s243 + $0x188] sm:$0xff] %v2129
        %2194 = vst [vmem:[%s243 + $0x190] sm:$0xff] %v2130
        %2195 = vst [vmem:[%s243 + $0x198] sm:$0xff] %v2131
        %2196 = vst [vmem:[%s243 + $0x1a0] sm:$0xff] %v2132
        %2197 = vst [vmem:[%s243 + $0x1a8] sm:$0xff] %v2133
        %2198 = vst [vmem:[%s243 + $0x1b0] sm:$0xff] %v2134
        %2199 = vst [vmem:[%s243 + $0x1b8] sm:$0xff] %v2135
        %2200 = vst [vmem:[%s243 + $0x1c0] sm:$0xff] %v2136
        %2201 = vst [vmem:[%s243 + $0x1c8] sm:$0xff] %v2137
        %2202 = vst [vmem:[%s243 + $0x1d0] sm:$0xff] %v2138
        %2203 = vst [vmem:[%s243 + $0x1d8] sm:$0xff] %v2139
        %2204 = vst [vmem:[%s243 + $0x1e0] sm:$0xff] %v2140
        %2205 = vst [vmem:[%s243 + $0x1e8] sm:$0xff] %v2141
        %2206 = vst [vmem:[%s243 + $0x1f0] sm:$0xff] %v2142
        %2207 = vst [vmem:[%s243 + $0x1f8] sm:$0xff] %v2143
        %s2208 = sand.u32 %s140, 1
        %s2209 = scalar_lea.sflag [#allocation4], %s2208
        %s2210 = sand.u32 %s140, 1
        %s2211 = smul.addr %s2210, 512
        %s2212 = scalar_lea.vmem [#allocation5], %s2211
        // Predicated region
        $region45: #{tpu_custom_call.1} parent=39 // pred_check
          %p2213 = pneg %p150
        $region46: #{tpu_custom_call.1} parent=39 // pred_check_branch
          %2215 = sbr.rel (%p2213) target = $region48
        $region47: #{tpu_custom_call.1} parent=39 // pred_region
          %s2216 = smul.u32 32, %s22
          %s2218 = ssub.s32 8192, 8192
          %2219 = vsyncadd %s2209, %s2218
          %s2220 = smul.addr %s2216, 2
          %s2221 = smul.addr %s2220, 128
          %s2222 = scalar_lea.hbm %s5, %s2221
          %s2223 = sshll.u32 %s2212, 4
          %s2224 = int_to_ptr.vmem [resolvable:$true] %s2223
          %2229 = dma.vmem_to_hbm [thread:$0]  %s2224, 8192, %s2222, %s2209, 256, 256, 16
        $region48: #{tpu_custom_call.1} parent=39 // pred_fallthru
          _
      $region40: #{tpu_custom_call.1} parent=5 // pred_fallthru
        _
      %p2230 = scmp.le.s32.totalorder 2, %s17
      // Predicated region
      $region49: #{tpu_custom_call.1} parent=5 // pred_check
        %p2231 = pneg %p2230
      $region50: #{tpu_custom_call.1} parent=5 // pred_check_branch
        %2233 = sbr.rel (%p2231) target = $region52
      $region51: #{tpu_custom_call.1} parent=5 // pred_region
        %s2234 = ssub.s32 %s17, 2
        // Predicated region
        $region53: #{tpu_custom_call.1} parent=51 // pred_check
          %p2235 = pneg %p156
        $region54: #{tpu_custom_call.1} parent=51 // pred_check_branch
          %2237 = sbr.rel (%p2235) target = $region56
        $region55: #{tpu_custom_call.1} parent=51 // pred_region
          %s2238 = sand.u32 %s141, 1
          %s2239 = scalar_lea.sflag [#allocation4], %s2238
          %s2240 = sand.u32 %s141, 1
          %s2241 = smul.addr %s2240, 512
          %s2242 = scalar_lea.vmem [#allocation5], %s2241
          %2243 = dma.done %s2239, 8192
        $region56: #{tpu_custom_call.1} parent=51 // pred_fallthru
          _
      $region52: #{tpu_custom_call.1} parent=5 // pred_fallthru
        _
    $region6: #{tpu_custom_call.1} parent=1 // loop_footer
      %s21 = sadd.s32 1, %s17
    $region7: #{tpu_custom_call.1} parent=1 // loop_footer_branch
      %16 = sbr.rel target = $region3
    $region8: #{tpu_custom_call.1} parent=1 // loop_exit
      _
    %2244 = vsyncpa [#allocation3], 1
    %s2245 = scalar_lea.sflag [#allocation3], 1
    %2246 = vsyncpa %s2245, 1
    %2247 = vsyncpa [#allocation4], 1
    %s2248 = scalar_lea.sflag [#allocation4], 1
    %2249 = vsyncpa %s2248, 1

</llo_original>
